<compile_context>
chip_gen: v7x
topology: tpu7x:2x2x1
jax: 0.10.0
libtpu: 0.0.40
codegen_flags: <defaults>
</compile_context>

<pallas_src>
import jax
import jax.numpy as jnp
import numpy as np
from jax.experimental import pallas as pl
from jax.experimental.pallas import tpu as pltpu


def _leaky(v):  # LeakyReLU(negative_slope=0.9)
    return jnp.where(v > 0, v, 0.9 * v)


def cnn_forward(x, params, *, batch_block=None):
    w1, b1, w2, b2, w3, b3, w4, b4 = params
    B, L = x.shape
    assert L % 4 == 0, "input_size must be divisible by 4"
    latent = w1.shape[0]
    C2 = 2 * latent
    L2, L4 = L // 2, L // 4
    num_class = w4.shape[0]

    # ---- batch blocking: >=2 grid steps when possible (v7x megacore) ----
    if batch_block is None:
        bb = B // 2 if (B % 2 == 0 and (B // 2) % 8 == 0) else B
    else:
        bb = batch_block
    assert B % bb == 0, "batch_block must divide batch"
    assert bb == B or bb % 8 == 0, "batch_block must be a multiple of 8 or == B"
    N = bb * L2                      # activation rows per grid step

    # ---- parameter slab: one lane-dense (PR, 128) f32 buffer, one DMA ----
    PW = 128 * max(1, -(-max(C2, num_class, latent) // 128))
    OUTW = 128 * (-(-num_class // 128))
    R_W1 = 0                          # (3, latent)       conv1 taps [k, c]
    R_B1 = R_W1 + 3                   # (1, latent)
    R_W2 = R_B1 + 1                   # (3*latent, C2)    conv2 [k*latent+ci, co]
    R_B2 = R_W2 + 3 * latent          # (1, C2)
    R_W3 = R_B2 + 1                   # (L4*C2, latent)   rows = n*C2 + ci
    R_B3 = R_W3 + L4 * C2             # (1, latent)
    R_W4 = R_B3 + 1                   # (latent, num_class)
    R_B4 = R_W4 + latent              # (1, num_class)
    PR = R_B4 + 1

    slab = jnp.zeros((PR, PW), jnp.float32)
    slab = slab.at[R_W1:R_B1, :latent].set(w1.reshape(latent, 3).T)
    slab = slab.at[R_B1, :latent].set(b1)
    slab = slab.at[R_W2:R_B2, :C2].set(
        jnp.transpose(w2, (2, 1, 0)).reshape(3 * latent, C2))
    slab = slab.at[R_B2, :C2].set(b2)
    slab = slab.at[R_W3:R_B3, :latent].set(
        jnp.transpose(w3.reshape(latent, C2, L4), (2, 1, 0)).reshape(L4 * C2, latent))
    slab = slab.at[R_B3, :latent].set(b3)
    slab = slab.at[R_W4:R_B4, :num_class].set(w4.T)
    slab = slab.at[R_B4, :num_class].set(b4)

    # ---- pair-folded input taps: row r=b*L2+m -> [x(2m-1), x(2m), x(2m+1), x(2m+2)]
    # (zero-padded at sample edges; layout plumbing done in the wrapper so the
    # kernel needs no conv1 shifts or cross-sample masks for stage 1).
    x_pad = jnp.pad(x.astype(jnp.float32), ((0, 0), (1, 1)))
    xin = jnp.stack([x_pad[:, 0:L:2], x_pad[:, 1:L + 1:2],
                     x_pad[:, 2:L + 2:2], x_pad[:, 3:L + 3:2]],
                    axis=-1).reshape(B * L2, 4)

    def kernel(x_ref, p_ref, o_ref, p1pad_ref, h2_ref):
        f32 = jnp.float32

        # ---- conv1 (Cin=1, k=3, pad=1) + LeakyReLU + max_pool1d(2), fused ----
        c0 = x_ref[:, 0:1]            # x[2m-1]
        c1 = x_ref[:, 1:2]            # x[2m]
        c2 = x_ref[:, 2:3]            # x[2m+1]
        c3 = x_ref[:, 3:4]            # x[2m+2]
        w1k0 = p_ref[R_W1 + 0:R_W1 + 1, :latent]
        w1k1 = p_ref[R_W1 + 1:R_W1 + 2, :latent]
        w1k2 = p_ref[R_W1 + 2:R_W1 + 3, :latent]
        b1r = p_ref[R_B1:R_B1 + 1, :latent]
        h1e = _leaky(c0 * w1k0 + c1 * w1k1 + c2 * w1k2 + b1r)   # position 2m
        h1o = _leaky(c1 * w1k0 + c2 * w1k1 + c3 * w1k2 + b1r)   # position 2m+1
        p1 = jnp.maximum(h1e, h1o)                              # (N, latent)

        # ---- conv2 shifts via halo scratch (no roll / slice+concat relayout) --
        p1pad_ref[pl.ds(8, N), :] = p1
        prev = p1pad_ref[pl.ds(7, N), :]                        # p1[m-1]
        nxt = p1pad_ref[pl.ds(9, N), :]                         # p1[m+1]
        pos = jax.lax.broadcasted_iota(jnp.int32, (N, 1), 0) % L2
        prev = jnp.where(pos == 0, 0.0, prev)                   # pad + no bleed
        nxt = jnp.where(pos == L2 - 1, 0.0, nxt)

        # ---- conv2 + LeakyReLU: 3 accumulating dots against W2 k-slices ----
        h2 = _leaky(
            jnp.dot(prev, p_ref[R_W2:R_W2 + latent, :C2],
                    preferred_element_type=f32)
            + jnp.dot(p1, p_ref[R_W2 + latent:R_W2 + 2 * latent, :C2],
                      preferred_element_type=f32)
            + jnp.dot(nxt, p_ref[R_W2 + 2 * latent:R_W2 + 3 * latent, :C2],
                      preferred_element_type=f32)
            + p_ref[R_B2:R_B2 + 1, :C2])                        # (N, C2)

        # ---- max_pool1d(2) fused with flatten+linear3 as K-tiled accumulation
        h2_ref[...] = h2
        acc = jnp.zeros((bb, latent), f32)
        # TODO(synk): for large input_size turn this static loop into a
        # reduction grid axis instead of an in-kernel unroll.
        for n in range(L4):
            pooled = jnp.maximum(
                h2_ref[pl.ds(2 * n, bb, stride=L2), :],
                h2_ref[pl.ds(2 * n + 1, bb, stride=L2), :])     # (bb, C2)
            acc = acc + jnp.dot(
                pooled, p_ref[R_W3 + n * C2:R_W3 + (n + 1) * C2, :latent],
                preferred_element_type=f32)
        y3 = _leaky(acc + p_ref[R_B3:R_B3 + 1, :latent])        # (bb, latent)

        # ---- classifier + LeakyReLU over padded (zeroed) lanes ----
        y4 = _leaky(jnp.dot(y3, p_ref[R_W4:R_B4, :OUTW],
                            preferred_element_type=f32)
                    + p_ref[R_B4:R_B4 + 1, :OUTW])              # (bb, OUTW)

        # ---- log_softmax over the first num_class lanes; lane-dense store ----
        lane = jax.lax.broadcasted_iota(jnp.int32, (bb, OUTW), 1)
        valid = lane < num_class
        m = jnp.max(jnp.where(valid, y4, -1e30), axis=1, keepdims=True)
        s = y4 - m
        e = jnp.where(valid, jnp.exp(s), 0.0)
        lse = jnp.log(jnp.sum(e, axis=1, keepdims=True))
        o_ref[...] = s - lse

    out = pl.pallas_call(
        kernel,
        out_shape=jax.ShapeDtypeStruct((B, OUTW), jnp.float32),
        grid=(B // bb,),
        in_specs=[
            pl.BlockSpec((N, 4), lambda i: (i, 0)),
            pl.BlockSpec((PR, PW), lambda i: (0, 0)),
        ],
        out_specs=pl.BlockSpec((bb, OUTW), lambda i: (i, 0)),
        scratch_shapes=[
            pltpu.VMEM((N + 16, latent), jnp.float32),   # p1 halo scratch
            pltpu.VMEM((N, C2), jnp.float32),            # h2 (for pool2 reads)
        ],
        compiler_params=pltpu.CompilerParams(
            dimension_semantics=("parallel",),
            vmem_limit_bytes=32 * 1024 * 1024),
    )(xin, slab)
    return out[:, :num_class]


def reference(x, params):
    """Pure-JAX reference matching the PyTorch forward (f32-exact matmuls)."""
    w1, b1, w2, b2, w3, b3, w4, b4 = params
    B, L = x.shape
    hp = jax.lax.Precision.HIGHEST

    def leaky(v):
        return jnp.where(v > 0, v, 0.9 * v)

    xin = x.reshape(B, 1, L)
    h1 = jax.lax.conv_general_dilated(xin, w1, (1,), [(1, 1)],
                                      dimension_numbers=("NCH", "OIH", "NCH"),
                                      precision=hp)
    h1 = leaky(h1 + b1.reshape(1, -1, 1))
    p1 = jnp.max(h1.reshape(B, h1.shape[1], L // 2, 2), axis=-1)
    h2 = jax.lax.conv_general_dilated(p1, w2, (1,), [(1, 1)],
                                      dimension_numbers=("NCH", "OIH", "NCH"),
                                      precision=hp)
    h2 = leaky(h2 + b2.reshape(1, -1, 1))
    p2 = jnp.max(h2.reshape(B, h2.shape[1], L // 4, 2), axis=-1)
    flat = p2.reshape(B, -1)
    y3 = leaky(jnp.dot(flat, w3.T, precision=hp) + b3)
    y4 = leaky(jnp.dot(y3, w4.T, precision=hp) + b4)
    return jax.nn.log_softmax(y4, axis=1)


if __name__ == "__main__":
    # B=16 so the default batch_block=8 gives a 2-step "parallel" grid.
    B, input_size, latent, num_class = 16, 16, 8, 4
    C2 = 2 * latent
    L4 = input_size // 4

    key = jax.random.PRNGKey(0)
    keys = jax.random.split(key, 9)
    x = jax.random.normal(keys[0], (B, input_size), jnp.float32)
    w1 = 0.2 * jax.random.normal(keys[1], (latent, 1, 3), jnp.float32)
    b1 = 0.1 * jax.random.normal(keys[2], (latent,), jnp.float32)
    w2 = 0.2 * jax.random.normal(keys[3], (C2, latent, 3), jnp.float32)
    b2 = 0.1 * jax.random.normal(keys[4], (C2,), jnp.float32)
    w3 = 0.2 * jax.random.normal(keys[5], (latent, C2 * L4), jnp.float32)
    b3 = 0.1 * jax.random.normal(keys[6], (latent,), jnp.float32)
    w4 = 0.2 * jax.random.normal(keys[7], (num_class, latent), jnp.float32)
    b4 = 0.1 * jax.random.normal(keys[8], (num_class,), jnp.float32)
    params = (w1, b1, w2, b2, w3, b3, w4, b4)

    out = jax.block_until_ready(cnn_forward(x, params))
    ref = jax.block_until_ready(reference(x, params))
    np.testing.assert_allclose(np.asarray(out), np.asarray(ref),
                               atol=2e-3, rtol=2e-3)
    print("KERNEL_OK")
</pallas_src>

<mosaic_0001>
module attributes {stable_mosaic.version = 11 : i64} {
  func.func @kernel(%arg0: i32, %arg1: memref<64x4xf32, #tpu.memory_space<vmem>>, %arg2: memref<103x128xf32, #tpu.memory_space<vmem>>, %arg3: memref<8x128xf32, #tpu.memory_space<vmem>>, %arg4: memref<80x8xf32, #tpu.memory_space<vmem>>, %arg5: memref<64x16xf32, #tpu.memory_space<vmem>>) attributes {dimension_semantics = [#tpu.dimension_semantics<parallel>], iteration_bounds = array<i64: 2>, scalar_prefetch = 0 : i64, scratch_operands = 2 : i64, tpu.core_type = #tpu.core_type<tc>, window_params = [{transform_indices = @transform_0, window_bounds = array<i64: 64, 4>}, {pipeline_mode = #tpu.pipeline_mode<synchronous>, transform_indices = @transform_1, window_bounds = array<i64: 103, 128>}, {transform_indices = @transform_2, window_bounds = array<i64: 8, 128>}]} {
    %c0 = arith.constant 0 : index
    %c0_0 = arith.constant 0 : index
    %0 = vector.load %arg1[%c0, %c0_0] : memref<64x4xf32, #tpu.memory_space<vmem>>, vector<64x1xf32>
    %c0_1 = arith.constant 0 : index
    %c1 = arith.constant 1 : index
    %1 = vector.load %arg1[%c0_1, %c1] : memref<64x4xf32, #tpu.memory_space<vmem>>, vector<64x1xf32>
    %c0_2 = arith.constant 0 : index
    %c2 = arith.constant 2 : index
    %2 = vector.load %arg1[%c0_2, %c2] : memref<64x4xf32, #tpu.memory_space<vmem>>, vector<64x1xf32>
    %c0_3 = arith.constant 0 : index
    %c3 = arith.constant 3 : index
    %3 = vector.load %arg1[%c0_3, %c3] : memref<64x4xf32, #tpu.memory_space<vmem>>, vector<64x1xf32>
    %c0_4 = arith.constant 0 : index
    %c0_5 = arith.constant 0 : index
    %4 = vector.load %arg2[%c0_4, %c0_5] : memref<103x128xf32, #tpu.memory_space<vmem>>, vector<1x8xf32>
    %c1_6 = arith.constant 1 : index
    %c0_7 = arith.constant 0 : index
    %5 = vector.load %arg2[%c1_6, %c0_7] : memref<103x128xf32, #tpu.memory_space<vmem>>, vector<1x8xf32>
    %c2_8 = arith.constant 2 : index
    %c0_9 = arith.constant 0 : index
    %6 = vector.load %arg2[%c2_8, %c0_9] : memref<103x128xf32, #tpu.memory_space<vmem>>, vector<1x8xf32>
    %c3_10 = arith.constant 3 : index
    %c0_11 = arith.constant 0 : index
    %7 = vector.load %arg2[%c3_10, %c0_11] : memref<103x128xf32, #tpu.memory_space<vmem>>, vector<1x8xf32>
    %8 = vector.broadcast %0 : vector<64x1xf32> to vector<64x8xf32>
    %9 = vector.broadcast %4 : vector<1x8xf32> to vector<64x8xf32>
    %10 = arith.mulf %8, %9 : vector<64x8xf32>
    %11 = vector.broadcast %1 : vector<64x1xf32> to vector<64x8xf32>
    %12 = vector.broadcast %5 : vector<1x8xf32> to vector<64x8xf32>
    %13 = arith.mulf %11, %12 : vector<64x8xf32>
    %14 = arith.addf %10, %13 : vector<64x8xf32>
    %15 = vector.broadcast %2 : vector<64x1xf32> to vector<64x8xf32>
    %16 = vector.broadcast %6 : vector<1x8xf32> to vector<64x8xf32>
    %17 = arith.mulf %15, %16 : vector<64x8xf32>
    %18 = arith.addf %14, %17 : vector<64x8xf32>
    %19 = vector.broadcast %7 : vector<1x8xf32> to vector<64x8xf32>
    %20 = arith.addf %18, %19 : vector<64x8xf32>
    %cst = arith.constant 0.000000e+00 : f32
    %21 = vector.broadcast %cst : f32 to vector<64x8xf32>
    %22 = arith.cmpf ogt, %20, %21 : vector<64x8xf32>
    %cst_12 = arith.constant 0.899999976 : f32
    %23 = vector.broadcast %cst_12 : f32 to vector<64x8xf32>
    %24 = arith.mulf %23, %20 : vector<64x8xf32>
    %25 = arith.select %22, %20, %24 : vector<64x8xi1>, vector<64x8xf32>
    %26 = vector.broadcast %1 : vector<64x1xf32> to vector<64x8xf32>
    %27 = vector.broadcast %4 : vector<1x8xf32> to vector<64x8xf32>
    %28 = arith.mulf %26, %27 : vector<64x8xf32>
    %29 = vector.broadcast %2 : vector<64x1xf32> to vector<64x8xf32>
    %30 = vector.broadcast %5 : vector<1x8xf32> to vector<64x8xf32>
    %31 = arith.mulf %29, %30 : vector<64x8xf32>
    %32 = arith.addf %28, %31 : vector<64x8xf32>
    %33 = vector.broadcast %3 : vector<64x1xf32> to vector<64x8xf32>
    %34 = vector.broadcast %6 : vector<1x8xf32> to vector<64x8xf32>
    %35 = arith.mulf %33, %34 : vector<64x8xf32>
    %36 = arith.addf %32, %35 : vector<64x8xf32>
    %37 = vector.broadcast %7 : vector<1x8xf32> to vector<64x8xf32>
    %38 = arith.addf %36, %37 : vector<64x8xf32>
    %cst_13 = arith.constant 0.000000e+00 : f32
    %39 = vector.broadcast %cst_13 : f32 to vector<64x8xf32>
    %40 = arith.cmpf ogt, %38, %39 : vector<64x8xf32>
    %cst_14 = arith.constant 0.899999976 : f32
    %41 = vector.broadcast %cst_14 : f32 to vector<64x8xf32>
    %42 = arith.mulf %41, %38 : vector<64x8xf32>
    %43 = arith.select %40, %38, %42 : vector<64x8xi1>, vector<64x8xf32>
    %44 = arith.maximumf %25, %43 : vector<64x8xf32>
    %c8 = arith.constant 8 : index
    %c0_15 = arith.constant 0 : index
    %45 = vector.load %arg4[%c8, %c0_15] : memref<80x8xf32, #tpu.memory_space<vmem>>, vector<64x8xf32>
    tpu.vector_store %arg4[%c8, %c0_15], %44 {strides = array<i32>} : memref<80x8xf32, #tpu.memory_space<vmem>>, vector<64x8xf32>,
    %c7 = arith.constant 7 : index
    %c0_16 = arith.constant 0 : index
    %46 = vector.load %arg4[%c7, %c0_16] : memref<80x8xf32, #tpu.memory_space<vmem>>, vector<64x8xf32>
    %c9 = arith.constant 9 : index
    %c0_17 = arith.constant 0 : index
    %47 = vector.load %arg4[%c9, %c0_17] : memref<80x8xf32, #tpu.memory_space<vmem>>, vector<64x8xf32>
    %48 = tpu.iota {dimensions = array<i32: 0>} : vector<64x1xi32>
    %c8_i32 = arith.constant 8 : i32
    %c0_i32 = arith.constant 0 : i32
    %49 = arith.cmpi eq, %c8_i32, %c0_i32 : i32
    %c1_i32 = arith.constant 1 : i32
    %50 = arith.select %49, %c1_i32, %c8_i32 : i32
    %51 = vector.broadcast %50 : i32 to vector<64x1xi32>
    %52 = arith.remsi %48, %51 : vector<64x1xi32>
    %c0_i32_18 = arith.constant 0 : i32
    %53 = vector.broadcast %c0_i32_18 : i32 to vector<64x1xi32>
    %54 = arith.cmpi ne, %52, %53 : vector<64x1xi32>
    %c0_i32_19 = arith.constant 0 : i32
    %55 = vector.broadcast %c0_i32_19 : i32 to vector<64x1xi32>
    %56 = arith.cmpi slt, %52, %55 : vector<64x1xi32>
    %c0_i32_20 = arith.constant 0 : i32
    %57 = arith.cmpi slt, %50, %c0_i32_20 : i32
    %58 = vector.broadcast %57 : i1 to vector<64x1xi1>
    %59 = vector.broadcast %58 : vector<64x1xi1> to vector<64x1xi1>
    %60 = arith.xori %56, %59 : vector<64x1xi1>
    %61 = arith.andi %60, %54 : vector<64x1xi1>
    %62 = vector.broadcast %50 : i32 to vector<64x1xi32>
    %63 = arith.addi %52, %62 : vector<64x1xi32>
    %64 = arith.select %61, %63, %52 : vector<64x1xi1>, vector<64x1xi32>
    %c0_i32_21 = arith.constant 0 : i32
    %65 = vector.broadcast %c0_i32_21 : i32 to vector<64x1xi32>
    %66 = arith.cmpi eq, %64, %65 : vector<64x1xi32>
    %cst_22 = arith.constant 0.000000e+00 : f32
    %67 = vector.shape_cast %66 : vector<64x1xi1> to vector<64x1xi1>
    %68 = vector.broadcast %67 : vector<64x1xi1> to vector<64x8xi1>
    %69 = vector.broadcast %cst_22 : f32 to vector<64x8xf32>
    %70 = arith.select %68, %69, %46 : vector<64x8xi1>, vector<64x8xf32>
    %c7_i32 = arith.constant 7 : i32
    %71 = vector.broadcast %c7_i32 : i32 to vector<64x1xi32>
    %72 = arith.cmpi eq, %64, %71 : vector<64x1xi32>
    %cst_23 = arith.constant 0.000000e+00 : f32
    %73 = vector.shape_cast %72 : vector<64x1xi1> to vector<64x1xi1>
    %74 = vector.broadcast %73 : vector<64x1xi1> to vector<64x8xi1>
    %75 = vector.broadcast %cst_23 : f32 to vector<64x8xf32>
    %76 = arith.select %74, %75, %47 : vector<64x8xi1>, vector<64x8xf32>
    %c4 = arith.constant 4 : index
    %c0_24 = arith.constant 0 : index
    %77 = vector.load %arg2[%c4, %c0_24] : memref<103x128xf32, #tpu.memory_space<vmem>>, vector<8x16xf32>
    %cst_25 = arith.constant dense<0.000000e+00> : vector<64x16xf32>
    %78 = tpu.matmul %70, %77, %cst_25 {dimension_numbers = #tpu.dot_dimension_numbers<[1], [0], [0], [1], [0, 0, 1, 1], [], []>} : vector<64x8xf32>, vector<8x16xf32>, vector<64x16xf32> -> vector<64x16xf32>
    %c12 = arith.constant 12 : index
    %c0_26 = arith.constant 0 : index
    %79 = vector.load %arg2[%c12, %c0_26] : memref<103x128xf32, #tpu.memory_space<vmem>>, vector<8x16xf32>
    %cst_27 = arith.constant dense<0.000000e+00> : vector<64x16xf32>
    %80 = tpu.matmul %44, %79, %cst_27 {dimension_numbers = #tpu.dot_dimension_numbers<[1], [0], [0], [1], [0, 0, 1, 1], [], []>} : vector<64x8xf32>, vector<8x16xf32>, vector<64x16xf32> -> vector<64x16xf32>
    %81 = arith.addf %78, %80 : vector<64x16xf32>
    %c20 = arith.constant 20 : index
    %c0_28 = arith.constant 0 : index
    %82 = vector.load %arg2[%c20, %c0_28] : memref<103x128xf32, #tpu.memory_space<vmem>>, vector<8x16xf32>
    %cst_29 = arith.constant dense<0.000000e+00> : vector<64x16xf32>
    %83 = tpu.matmul %76, %82, %cst_29 {dimension_numbers = #tpu.dot_dimension_numbers<[1], [0], [0], [1], [0, 0, 1, 1], [], []>} : vector<64x8xf32>, vector<8x16xf32>, vector<64x16xf32> -> vector<64x16xf32>
    %84 = arith.addf %81, %83 : vector<64x16xf32>
    %c28 = arith.constant 28 : index
    %c0_30 = arith.constant 0 : index
    %85 = vector.load %arg2[%c28, %c0_30] : memref<103x128xf32, #tpu.memory_space<vmem>>, vector<1x16xf32>
    %86 = vector.broadcast %85 : vector<1x16xf32> to vector<64x16xf32>
    %87 = arith.addf %84, %86 : vector<64x16xf32>
    %cst_31 = arith.constant 0.000000e+00 : f32
    %88 = vector.broadcast %cst_31 : f32 to vector<64x16xf32>
    %89 = arith.cmpf ogt, %87, %88 : vector<64x16xf32>
    %cst_32 = arith.constant 0.899999976 : f32
    %90 = vector.broadcast %cst_32 : f32 to vector<64x16xf32>
    %91 = arith.mulf %90, %87 : vector<64x16xf32>
    %92 = arith.select %89, %87, %91 : vector<64x16xi1>, vector<64x16xf32>
    %c0_33 = arith.constant 0 : index
    %c0_34 = arith.constant 0 : index
    %93 = vector.load %arg5[%c0_33, %c0_34] : memref<64x16xf32, #tpu.memory_space<vmem>>, vector<64x16xf32>
    tpu.vector_store %arg5[%c0_33, %c0_34], %92 {strides = array<i32>} : memref<64x16xf32, #tpu.memory_space<vmem>>, vector<64x16xf32>,
    %cst_35 = arith.constant 0.000000e+00 : f32
    %94 = vector.broadcast %cst_35 : f32 to vector<8x8xf32>
    %c0_36 = arith.constant 0 : index
    %c0_37 = arith.constant 0 : index
    %95 = tpu.strided_load %arg5[%c0_36, %c0_37] {strides = array<i32: 8, 1>} : memref<64x16xf32, #tpu.memory_space<vmem>>, vector<8x16xf32>
    %c1_38 = arith.constant 1 : index
    %c0_39 = arith.constant 0 : index
    %96 = tpu.strided_load %arg5[%c1_38, %c0_39] {strides = array<i32: 8, 1>} : memref<64x16xf32, #tpu.memory_space<vmem>>, vector<8x16xf32>
    %97 = arith.maximumf %95, %96 : vector<8x16xf32>
    %c29 = arith.constant 29 : index
    %c0_40 = arith.constant 0 : index
    %98 = vector.load %arg2[%c29, %c0_40] : memref<103x128xf32, #tpu.memory_space<vmem>>, vector<16x8xf32>
    %cst_41 = arith.constant dense<0.000000e+00> : vector<8x8xf32>
    %99 = tpu.matmul %97, %98, %cst_41 {dimension_numbers = #tpu.dot_dimension_numbers<[1], [0], [0], [1], [0, 0, 1, 1], [], []>} : vector<8x16xf32>, vector<16x8xf32>, vector<8x8xf32> -> vector<8x8xf32>
    %100 = arith.addf %94, %99 : vector<8x8xf32>
    %c2_42 = arith.constant 2 : index
    %c0_43 = arith.constant 0 : index
    %101 = tpu.strided_load %arg5[%c2_42, %c0_43] {strides = array<i32: 8, 1>} : memref<64x16xf32, #tpu.memory_space<vmem>>, vector<8x16xf32>
    %c3_44 = arith.constant 3 : index
    %c0_45 = arith.constant 0 : index
    %102 = tpu.strided_load %arg5[%c3_44, %c0_45] {strides = array<i32: 8, 1>} : memref<64x16xf32, #tpu.memory_space<vmem>>, vector<8x16xf32>
    %103 = arith.maximumf %101, %102 : vector<8x16xf32>
    %c45 = arith.constant 45 : index
    %c0_46 = arith.constant 0 : index
    %104 = vector.load %arg2[%c45, %c0_46] : memref<103x128xf32, #tpu.memory_space<vmem>>, vector<16x8xf32>
    %cst_47 = arith.constant dense<0.000000e+00> : vector<8x8xf32>
    %105 = tpu.matmul %103, %104, %cst_47 {dimension_numbers = #tpu.dot_dimension_numbers<[1], [0], [0], [1], [0, 0, 1, 1], [], []>} : vector<8x16xf32>, vector<16x8xf32>, vector<8x8xf32> -> vector<8x8xf32>
    %106 = arith.addf %100, %105 : vector<8x8xf32>
    %c4_48 = arith.constant 4 : index
    %c0_49 = arith.constant 0 : index
    %107 = tpu.strided_load %arg5[%c4_48, %c0_49] {strides = array<i32: 8, 1>} : memref<64x16xf32, #tpu.memory_space<vmem>>, vector<8x16xf32>
    %c5 = arith.constant 5 : index
    %c0_50 = arith.constant 0 : index
    %108 = tpu.strided_load %arg5[%c5, %c0_50] {strides = array<i32: 8, 1>} : memref<64x16xf32, #tpu.memory_space<vmem>>, vector<8x16xf32>
    %109 = arith.maximumf %107, %108 : vector<8x16xf32>
    %c61 = arith.constant 61 : index
    %c0_51 = arith.constant 0 : index
    %110 = vector.load %arg2[%c61, %c0_51] : memref<103x128xf32, #tpu.memory_space<vmem>>, vector<16x8xf32>
    %cst_52 = arith.constant dense<0.000000e+00> : vector<8x8xf32>
    %111 = tpu.matmul %109, %110, %cst_52 {dimension_numbers = #tpu.dot_dimension_numbers<[1], [0], [0], [1], [0, 0, 1, 1], [], []>} : vector<8x16xf32>, vector<16x8xf32>, vector<8x8xf32> -> vector<8x8xf32>
    %112 = arith.addf %106, %111 : vector<8x8xf32>
    %c6 = arith.constant 6 : index
    %c0_53 = arith.constant 0 : index
    %113 = tpu.strided_load %arg5[%c6, %c0_53] {strides = array<i32: 8, 1>} : memref<64x16xf32, #tpu.memory_space<vmem>>, vector<8x16xf32>
    %c7_54 = arith.constant 7 : index
    %c0_55 = arith.constant 0 : index
    %114 = tpu.strided_load %arg5[%c7_54, %c0_55] {strides = array<i32: 8, 1>} : memref<64x16xf32, #tpu.memory_space<vmem>>, vector<8x16xf32>
    %115 = arith.maximumf %113, %114 : vector<8x16xf32>
    %c77 = arith.constant 77 : index
    %c0_56 = arith.constant 0 : index
    %116 = vector.load %arg2[%c77, %c0_56] : memref<103x128xf32, #tpu.memory_space<vmem>>, vector<16x8xf32>
    %cst_57 = arith.constant dense<0.000000e+00> : vector<8x8xf32>
    %117 = tpu.matmul %115, %116, %cst_57 {dimension_numbers = #tpu.dot_dimension_numbers<[1], [0], [0], [1], [0, 0, 1, 1], [], []>} : vector<8x16xf32>, vector<16x8xf32>, vector<8x8xf32> -> vector<8x8xf32>
    %118 = arith.addf %112, %117 : vector<8x8xf32>
    %c93 = arith.constant 93 : index
    %c0_58 = arith.constant 0 : index
    %119 = vector.load %arg2[%c93, %c0_58] : memref<103x128xf32, #tpu.memory_space<vmem>>, vector<1x8xf32>
    %120 = vector.broadcast %119 : vector<1x8xf32> to vector<8x8xf32>
    %121 = arith.addf %118, %120 : vector<8x8xf32>
    %cst_59 = arith.constant 0.000000e+00 : f32
    %122 = vector.broadcast %cst_59 : f32 to vector<8x8xf32>
    %123 = arith.cmpf ogt, %121, %122 : vector<8x8xf32>
    %cst_60 = arith.constant 0.899999976 : f32
    %124 = vector.broadcast %cst_60 : f32 to vector<8x8xf32>
    %125 = arith.mulf %124, %121 : vector<8x8xf32>
    %126 = arith.select %123, %121, %125 : vector<8x8xi1>, vector<8x8xf32>
    %c94 = arith.constant 94 : index
    %c0_61 = arith.constant 0 : index
    %127 = vector.load %arg2[%c94, %c0_61] : memref<103x128xf32, #tpu.memory_space<vmem>>, vector<8x128xf32>
    %cst_62 = arith.constant dense<0.000000e+00> : vector<8x128xf32>
    %128 = tpu.matmul %126, %127, %cst_62 {dimension_numbers = #tpu.dot_dimension_numbers<[1], [0], [0], [1], [0, 0, 1, 1], [], []>} : vector<8x8xf32>, vector<8x128xf32>, vector<8x128xf32> -> vector<8x128xf32>
    %c102 = arith.constant 102 : index
    %c0_63 = arith.constant 0 : index
    %129 = vector.load %arg2[%c102, %c0_63] : memref<103x128xf32, #tpu.memory_space<vmem>>, vector<1x128xf32>
    %130 = vector.broadcast %129 : vector<1x128xf32> to vector<8x128xf32>
    %131 = arith.addf %128, %130 : vector<8x128xf32>
    %cst_64 = arith.constant 0.000000e+00 : f32
    %132 = vector.broadcast %cst_64 : f32 to vector<8x128xf32>
    %133 = arith.cmpf ogt, %131, %132 : vector<8x128xf32>
    %cst_65 = arith.constant 0.899999976 : f32
    %134 = vector.broadcast %cst_65 : f32 to vector<8x128xf32>
    %135 = arith.mulf %134, %131 : vector<8x128xf32>
    %136 = arith.select %133, %131, %135 : vector<8x128xi1>, vector<8x128xf32>
    %137 = tpu.iota {dimensions = array<i32: 1>} : vector<8x128xi32>
    %c4_i32 = arith.constant 4 : i32
    %138 = vector.broadcast %c4_i32 : i32 to vector<8x128xi32>
    %139 = arith.cmpi slt, %137, %138 : vector<8x128xi32>
    %cst_66 = arith.constant -1.000000e+30 : f32
    %140 = vector.broadcast %cst_66 : f32 to vector<8x128xf32>
    %141 = arith.select %139, %136, %140 : vector<8x128xi1>, vector<8x128xf32>
    %cst_67 = arith.constant dense<0xFF800000> : vector<8xf32>
    %142 = vector.multi_reduction <maximumf>, %141, %cst_67 [1] : vector<8x128xf32> to vector<8xf32>
    %143 = vector.shape_cast %142 : vector<8xf32> to vector<8x1xf32>
    %144 = vector.broadcast %143 : vector<8x1xf32> to vector<8x128xf32>
    %145 = arith.subf %136, %144 : vector<8x128xf32>
    %146 = math.exp %145 : vector<8x128xf32>
    %cst_68 = arith.constant 0.000000e+00 : f32
    %147 = vector.broadcast %cst_68 : f32 to vector<8x128xf32>
    %148 = arith.select %139, %146, %147 : vector<8x128xi1>, vector<8x128xf32>
    %cst_69 = arith.constant dense<0.000000e+00> : vector<8xf32>
    %149 = vector.multi_reduction <add>, %148, %cst_69 [1] : vector<8x128xf32> to vector<8xf32>
    %150 = vector.shape_cast %149 : vector<8xf32> to vector<8x1xf32>
    %151 = math.log %150 : vector<8x1xf32>
    %152 = vector.broadcast %151 : vector<8x1xf32> to vector<8x128xf32>
    %153 = arith.subf %145, %152 : vector<8x128xf32>
    %c0_70 = arith.constant 0 : index
    %c0_71 = arith.constant 0 : index
    %154 = vector.load %arg3[%c0_70, %c0_71] : memref<8x128xf32, #tpu.memory_space<vmem>>, vector<8x128xf32>
    tpu.vector_store %arg3[%c0_70, %c0_71], %153 {strides = array<i32>} : memref<8x128xf32, #tpu.memory_space<vmem>>, vector<8x128xf32>,
    return
  }
  func.func @transform_0(%arg0: i32) -> (i32, i32) {
    %c0_i32 = arith.constant 0 : i32
    %c0_i32_0 = arith.constant 0 : i32
    return %arg0, %c0_i32 : i32, i32
  }
  func.func @transform_1(%arg0: i32) -> (i32, i32) {
    %c0_i32 = arith.constant 0 : i32
    %c0_i32_0 = arith.constant 0 : i32
    %c0_i32_1 = arith.constant 0 : i32
    return %c0_i32, %c0_i32_0 : i32, i32
  }
  func.func @transform_2(%arg0: i32) -> (i32, i32) {
    %c0_i32 = arith.constant 0 : i32
    %c0_i32_0 = arith.constant 0 : i32
    return %arg0, %c0_i32 : i32, i32
  }
}

</mosaic_0001>

<llo_original>
// kernel: tpu_custom_call.1
$region0: #{tpu_custom_call.1}
  #allocation0 [shape = 'u32[]', space=smem, size = 0x4, offset = 0x4, fixed_abs, tag = 'smem constant byte address 0x4 - core index']
  #allocation1 [shape = 'u32[144,128]{1,0:T(1,128)}', space=vmem, size = 0x12000, scoped, tag = 'internal scratch']
  #allocation2 [shape = 'f32[80,8]{1,0:T(8,128)}', space=vmem, size = 0xa000, scoped, tag = 'scratch operand']
  #allocation3 [shape = 'f32[64,16]{1,0:T(8,128)}', space=vmem, size = 0x8000, scoped, tag = 'scratch operand']
  %s0 = inlined_call_operand.vmem [shape: f32[128,4], index: 0, kind: input, shape index: {}]
  %s1 = inlined_call_operand.vmem [shape: f32[103,128], index: 1, kind: input, shape index: {}]
  %s2 = inlined_call_operand.hbm [shape: f32[16,128], index: 2, kind: output, shape index: {}]
  %s3 = sld [smem:[#allocation0]]
  $region41: #{tpu_custom_call.1} parent=0
    _
  %s5 = ssub.s32 1, %s3
  %s6 = scalar_select 0, %s5, %s3
  $region1: #{tpu_custom_call.1} parent=0
    #allocation4 [shape = 'u8[8192]{0}', space=vmem, size = 0x2000, scoped, tag = 'output window, operand 0']
    #allocation5 [shape = 's32[2]{0}', space=sflag, size = 0x8, scoped, tag = 'scoped memory for tpu_custom_call.1']
    %7 = vsyncpa [#allocation5], 0
    %s8 = scalar_lea.sflag [#allocation5], 1
    %9 = vsyncpa %s8, 0
    loop: start=0, step=1, limit=4
    $region2: #{tpu_custom_call.1} parent=1 // loop_pre_header
      _
    $region3: #{tpu_custom_call.1} parent=1 // loop_header
      %s11 = sphi 0, %s15
      %p12 = scmp.ge.s32.totalorder %s11, 4
      %s21 = sphi 0, %s23
      %s24 = sphi 0, %s21
      %s25 = sphi 0, %s24
      %s41 = sphi 0, %s25
      %s45 = sphi 0, %s45
      %s47 = sphi 0, %s45
      %s48 = sphi 0, %s47
      %s62 = sphi 0, %s48
      %s68 = sphi 0, %s70
      %s71 = sphi 0, %s68
      %s72 = sphi 0, %s71
      %s88 = sphi 0, %s72
    $region4: #{tpu_custom_call.1} parent=1 // loop_header_branch
      %14 = sbr.rel (%p12) target = $region8
    $region5: #{tpu_custom_call.1} parent=1 // loop_body
      %s16 = ssub.s32 %s11, 1
      %s17 = ssub.s32 %s11, 2
      %s18 = sadd.s32 %s11, 1
      %s19 = ssub.s32 %s11, %s18
      %p20 = scmp.eq.s32.totalorder %s19, 0
      %s22 = sadd.s32 %s21, 1
      %s23 = scalar_select %p20, %s21, %s22
      %p26 = pneg %p20
      %p27 = scmp.eq.s32.totalorder %s11, 1
      %p28 = por %p26, %p27
      %p29 = scmp.ne.s32.totalorder %s21, %s24
      %p30 = scmp.eq.s32.totalorder %s11, 0
      %p31 = por %p29, %p30
      %p32 = scmp.ne.s32.totalorder %s21, %s24
      %p33 = scmp.eq.s32.totalorder %s16, 1
      %p34 = por %p32, %p33
      %p35 = scmp.ne.s32.totalorder %s24, %s25
      %p36 = scmp.eq.s32.totalorder %s16, 0
      %p37 = por %p35, %p36
      %p38 = scmp.ne.s32.totalorder %s24, %s25
      %p39 = scmp.eq.s32.totalorder %s17, 1
      %p40 = por %p38, %p39
      %p42 = scmp.ne.s32.totalorder %s25, %s41
      %p43 = scmp.eq.s32.totalorder %s17, 0
      %p44 = por %p42, %p43
      %s46 = sadd.s32 %s45, 1
      %p49 = scmp.eq.s32.totalorder %s11, 1
      %p50 = scmp.ne.s32.totalorder %s45, %s47
      %p51 = scmp.eq.s32.totalorder %s11, 0
      %p52 = por %p50, %p51
      %p53 = scmp.ne.s32.totalorder %s45, %s47
      %p54 = scmp.eq.s32.totalorder %s16, 1
      %p55 = por %p53, %p54
      %p56 = scmp.ne.s32.totalorder %s47, %s48
      %p57 = scmp.eq.s32.totalorder %s16, 0
      %p58 = por %p56, %p57
      %p59 = scmp.ne.s32.totalorder %s47, %s48
      %p60 = scmp.eq.s32.totalorder %s17, 1
      %p61 = por %p59, %p60
      %p63 = scmp.ne.s32.totalorder %s48, %s62
      %p64 = scmp.eq.s32.totalorder %s17, 0
      %p65 = por %p63, %p64
      %s66 = ssub.s32 %s11, %s18
      %p67 = scmp.eq.s32.totalorder %s66, 0
      %s69 = sadd.s32 %s68, 1
      %s70 = scalar_select %p67, %s68, %s69
      %p73 = pneg %p67
      %p74 = scmp.eq.s32.totalorder %s11, 1
      %p75 = por %p73, %p74
      %p76 = scmp.ne.s32.totalorder %s68, %s71
      %p77 = scmp.eq.s32.totalorder %s11, 0
      %p78 = por %p76, %p77
      %p79 = scmp.ne.s32.totalorder %s68, %s71
      %p80 = scmp.eq.s32.totalorder %s16, 1
      %p81 = por %p79, %p80
      %p82 = scmp.ne.s32.totalorder %s71, %s72
      %p83 = scmp.eq.s32.totalorder %s16, 0
      %p84 = por %p82, %p83
      %p85 = scmp.ne.s32.totalorder %s71, %s72
      %p86 = scmp.eq.s32.totalorder %s17, 1
      %p87 = por %p85, %p86
      %p89 = scmp.ne.s32.totalorder %s72, %s88
      %p90 = scmp.eq.s32.totalorder %s17, 0
      %p91 = por %p89, %p90
      %p92 = scmp.le.s32.totalorder 1, %s11
      %p93 = scmp.lt.s32.totalorder %s11, 3
      %p94 = pnand %p92, %p93
      %p95 = pneg %p94
      // Predicated region
      $region9: #{tpu_custom_call.1} parent=5 // pred_check
        _
      $region10: #{tpu_custom_call.1} parent=5 // pred_check_branch
        %97 = sbr.rel (%p94) target = $region12
      $region11: #{tpu_custom_call.1} parent=5 // pred_region
        %s98 = ssub.s32 %s11, 1
        // Predicated region
        $region13: #{tpu_custom_call.1} parent=11 // pred_check
          %p99 = pneg %p58
        $region14: #{tpu_custom_call.1} parent=11 // pred_check_branch
          %101 = sbr.rel (%p99) target = $region16
        $region15: #{tpu_custom_call.1} parent=11 // pred_region
          _
        $region16: #{tpu_custom_call.1} parent=11 // pred_fallthru
          _
      $region12: #{tpu_custom_call.1} parent=5 // pred_fallthru
        _
      %p102 = scmp.lt.s32.totalorder %s11, 2
      // Predicated region
      $region17: #{tpu_custom_call.1} parent=5 // pred_check
        %p103 = pneg %p102
      $region18: #{tpu_custom_call.1} parent=5 // pred_check_branch
        %105 = sbr.rel (%p103) target = $region20
      $region19: #{tpu_custom_call.1} parent=5 // pred_region
        // Predicated region
        $region21: #{tpu_custom_call.1} parent=19 // pred_check
          %p106 = pneg %p31
        $region22: #{tpu_custom_call.1} parent=19 // pred_check_branch
          %108 = sbr.rel (%p106) target = $region24
        $region23: #{tpu_custom_call.1} parent=19 // pred_region
          %s109 = smul.u32 8, %s11
          %p110 = scmp.lt.s32.totalorder %s109, 15
          %s111 = scalar_select %p110, %s109, 15
          %s112 = smul.addr %s111, 8
          %s113 = scalar_lea.vmem %s0, %s112
          %s114 = smul.u32 8, %s11
        $region24: #{tpu_custom_call.1} parent=19 // pred_fallthru
          _
      $region20: #{tpu_custom_call.1} parent=5 // pred_fallthru
        _
      %p115 = scmp.le.s32.totalorder 1, %s11
      %p116 = scmp.lt.s32.totalorder %s11, 3
      %p117 = pnand %p115, %p116
      %p118 = pneg %p117
      // Predicated region
      $region25: #{tpu_custom_call.1} parent=5 // pred_check
        _
      $region26: #{tpu_custom_call.1} parent=5 // pred_check_branch
        %120 = sbr.rel (%p117) target = $region28
      $region27: #{tpu_custom_call.1} parent=5 // pred_region
        %s121 = ssub.s32 %s11, 1
        %s122 = smul.u32 8, %s16
        %p123 = scmp.lt.s32.totalorder %s122, 15
        %s124 = scalar_select %p123, %s122, 15
        %s125 = smul.addr %s124, 8
        %s126 = scalar_lea.vmem %s0, %s125
        %p127 = pneg %p37
        %p128 = pneg %p34
        %p129 = pneg %p58
        %p130 = pneg %p55
        %p131 = pneg %p84
        %p132 = pneg %p81
        %s133 = sand.u32 %s71, 1
        %s134 = scalar_lea.sflag [#allocation5], %s133
        %s135 = sand.u32 %s71, 1
        %s136 = smul.addr %s135, 8
        %s137 = scalar_lea.vmem [#allocation4], %s136
        %s138 = smul.u32 8, %s16
        %p139 = scmp.lt.s32.totalorder %s138, 15
        %s140 = scalar_select %p139, %s138, 15
        %s141 = smul.addr %s140, 8
        %s142 = scalar_lea.vmem %s0, %s141
        %s143 = smul.u32 8, %s16
        %v144 = vld [vmem:[%s142] sm:$0xff]
        %v145 = vld [vmem:[%s142 + $0x8] sm:$0xff]
        %v146 = vld [vmem:[%s142 + $0x10] sm:$0xff]
        %v147 = vld [vmem:[%s142 + $0x18] sm:$0xff]
        %v148 = vld [vmem:[%s142 + $0x20] sm:$0xff]
        %v149 = vld [vmem:[%s142 + $0x28] sm:$0xff]
        %v150 = vld [vmem:[%s142 + $0x30] sm:$0xff]
        %v151 = vld [vmem:[%s142 + $0x38] sm:$0xff]
        %v152 = vld [vmem:[%s1] sm:$0x1]
        %v153 = vld [vmem:[%s1 + $0x1] sm:$0x1]
        %v154 = vld [vmem:[%s1 + $0x2] sm:$0x1]
        %v155 = vld [vmem:[%s1 + $0x3] sm:$0x1]
        %157 = vset.pattern.permute.xlu0 0
        %158 = vperm.xlu0 %157, %v144
        %v159 = vpop.permute.xlu0 %158
        %162 = vset.pattern.permute.xlu0 0
        %163 = vperm.xlu0 %162, %v145
        %v164 = vpop.permute.xlu0 %163
        %167 = vset.pattern.permute.xlu0 0
        %168 = vperm.xlu0 %167, %v146
        %v169 = vpop.permute.xlu0 %168
        %172 = vset.pattern.permute.xlu0 0
        %173 = vperm.xlu0 %172, %v147
        %v174 = vpop.permute.xlu0 %173
        %177 = vset.pattern.permute.xlu0 0
        %178 = vperm.xlu0 %177, %v148
        %v179 = vpop.permute.xlu0 %178
        %182 = vset.pattern.permute.xlu0 0
        %183 = vperm.xlu0 %182, %v149
        %v184 = vpop.permute.xlu0 %183
        %187 = vset.pattern.permute.xlu0 0
        %188 = vperm.xlu0 %187, %v150
        %v189 = vpop.permute.xlu0 %188
        %192 = vset.pattern.permute.xlu0 0
        %193 = vperm.xlu0 %192, %v151
        %v194 = vpop.permute.xlu0 %193
        %v196 = vlaneseq
        %v197 = vshrl.u32 %v196, 7
        %v198 = vsub.s32 0, %v197
        %v199 = vrot.slane %v152, %v198
        %v200 = vmul.f32 %v159, %v199
        %v201 = vmul.f32 %v164, %v199
        %v202 = vmul.f32 %v169, %v199
        %v203 = vmul.f32 %v174, %v199
        %v204 = vmul.f32 %v179, %v199
        %v205 = vmul.f32 %v184, %v199
        %v206 = vmul.f32 %v189, %v199
        %v207 = vmul.f32 %v194, %v199
        %208 = vset.pattern.permute.xlu0 1
        %209 = vperm.xlu0 %208, %v144
        %v210 = vpop.permute.xlu0 %209
        %212 = vset.pattern.permute.xlu0 1
        %213 = vperm.xlu0 %212, %v145
        %v214 = vpop.permute.xlu0 %213
        %216 = vset.pattern.permute.xlu0 1
        %217 = vperm.xlu0 %216, %v146
        %v218 = vpop.permute.xlu0 %217
        %220 = vset.pattern.permute.xlu0 1
        %221 = vperm.xlu0 %220, %v147
        %v222 = vpop.permute.xlu0 %221
        %224 = vset.pattern.permute.xlu0 1
        %225 = vperm.xlu0 %224, %v148
        %v226 = vpop.permute.xlu0 %225
        %228 = vset.pattern.permute.xlu0 1
        %229 = vperm.xlu0 %228, %v149
        %v230 = vpop.permute.xlu0 %229
        %232 = vset.pattern.permute.xlu0 1
        %233 = vperm.xlu0 %232, %v150
        %v234 = vpop.permute.xlu0 %233
        %236 = vset.pattern.permute.xlu0 1
        %237 = vperm.xlu0 %236, %v151
        %v238 = vpop.permute.xlu0 %237
        %v240 = vlaneseq
        %v241 = vshrl.u32 %v240, 7
        %v242 = vsub.s32 0, %v241
        %v243 = vrot.slane %v153, %v242
        %v244 = vmul.f32 %v210, %v243
        %v245 = vmul.f32 %v214, %v243
        %v246 = vmul.f32 %v218, %v243
        %v247 = vmul.f32 %v222, %v243
        %v248 = vmul.f32 %v226, %v243
        %v249 = vmul.f32 %v230, %v243
        %v250 = vmul.f32 %v234, %v243
        %v251 = vmul.f32 %v238, %v243
        %v252 = vadd.f32 %v200, %v244
        %v253 = vadd.f32 %v201, %v245
        %v254 = vadd.f32 %v202, %v246
        %v255 = vadd.f32 %v203, %v247
        %v256 = vadd.f32 %v204, %v248
        %v257 = vadd.f32 %v205, %v249
        %v258 = vadd.f32 %v206, %v250
        %v259 = vadd.f32 %v207, %v251
        %260 = vset.pattern.permute.xlu0 2
        %261 = vperm.xlu0 %260, %v144
        %v262 = vpop.permute.xlu0 %261
        %264 = vset.pattern.permute.xlu0 2
        %265 = vperm.xlu0 %264, %v145
        %v266 = vpop.permute.xlu0 %265
        %268 = vset.pattern.permute.xlu0 2
        %269 = vperm.xlu0 %268, %v146
        %v270 = vpop.permute.xlu0 %269
        %272 = vset.pattern.permute.xlu0 2
        %273 = vperm.xlu0 %272, %v147
        %v274 = vpop.permute.xlu0 %273
        %276 = vset.pattern.permute.xlu0 2
        %277 = vperm.xlu0 %276, %v148
        %v278 = vpop.permute.xlu0 %277
        %280 = vset.pattern.permute.xlu0 2
        %281 = vperm.xlu0 %280, %v149
        %v282 = vpop.permute.xlu0 %281
        %284 = vset.pattern.permute.xlu0 2
        %285 = vperm.xlu0 %284, %v150
        %v286 = vpop.permute.xlu0 %285
        %288 = vset.pattern.permute.xlu0 2
        %289 = vperm.xlu0 %288, %v151
        %v290 = vpop.permute.xlu0 %289
        %v292 = vlaneseq
        %v293 = vshrl.u32 %v292, 7
        %v294 = vsub.s32 0, %v293
        %v295 = vrot.slane %v154, %v294
        %v296 = vmul.f32 %v262, %v295
        %v297 = vmul.f32 %v266, %v295
        %v298 = vmul.f32 %v270, %v295
        %v299 = vmul.f32 %v274, %v295
        %v300 = vmul.f32 %v278, %v295
        %v301 = vmul.f32 %v282, %v295
        %v302 = vmul.f32 %v286, %v295
        %v303 = vmul.f32 %v290, %v295
        %v304 = vadd.f32 %v252, %v296
        %v305 = vadd.f32 %v253, %v297
        %v306 = vadd.f32 %v254, %v298
        %v307 = vadd.f32 %v255, %v299
        %v308 = vadd.f32 %v256, %v300
        %v309 = vadd.f32 %v257, %v301
        %v310 = vadd.f32 %v258, %v302
        %v311 = vadd.f32 %v259, %v303
        %v312 = vlaneseq
        %v313 = vshrl.u32 %v312, 7
        %v314 = vsub.s32 0, %v313
        %v315 = vrot.slane %v155, %v314
        %v316 = vadd.f32 %v304, %v315
        %v317 = vadd.f32 %v305, %v315
        %v318 = vadd.f32 %v306, %v315
        %v319 = vadd.f32 %v307, %v315
        %v320 = vadd.f32 %v308, %v315
        %v321 = vadd.f32 %v309, %v315
        %v322 = vadd.f32 %v310, %v315
        %v323 = vadd.f32 %v311, %v315
        %vm324 = vcmp.gt.f32.partialorder %v316, 0.0
        %vm325 = vcmp.gt.f32.partialorder %v317, 0.0
        %vm326 = vcmp.gt.f32.partialorder %v318, 0.0
        %vm327 = vcmp.gt.f32.partialorder %v319, 0.0
        %vm328 = vcmp.gt.f32.partialorder %v320, 0.0
        %vm329 = vcmp.gt.f32.partialorder %v321, 0.0
        %vm330 = vcmp.gt.f32.partialorder %v322, 0.0
        %vm331 = vcmp.gt.f32.partialorder %v323, 0.0
        %v332 = vmul.f32 %v316, 0.9
        %v333 = vmul.f32 %v317, 0.9
        %v334 = vmul.f32 %v318, 0.9
        %v335 = vmul.f32 %v319, 0.9
        %v336 = vmul.f32 %v320, 0.9
        %v337 = vmul.f32 %v321, 0.9
        %v338 = vmul.f32 %v322, 0.9
        %v339 = vmul.f32 %v323, 0.9
        %v340 = vsel %vm324, %v316, %v332
        %v341 = vsel %vm325, %v317, %v333
        %v342 = vsel %vm326, %v318, %v334
        %v343 = vsel %vm327, %v319, %v335
        %v344 = vsel %vm328, %v320, %v336
        %v345 = vsel %vm329, %v321, %v337
        %v346 = vsel %vm330, %v322, %v338
        %v347 = vsel %vm331, %v323, %v339
        %v348 = vmul.f32 %v210, %v199
        %v349 = vmul.f32 %v214, %v199
        %v350 = vmul.f32 %v218, %v199
        %v351 = vmul.f32 %v222, %v199
        %v352 = vmul.f32 %v226, %v199
        %v353 = vmul.f32 %v230, %v199
        %v354 = vmul.f32 %v234, %v199
        %v355 = vmul.f32 %v238, %v199
        %v356 = vmul.f32 %v262, %v243
        %v357 = vmul.f32 %v266, %v243
        %v358 = vmul.f32 %v270, %v243
        %v359 = vmul.f32 %v274, %v243
        %v360 = vmul.f32 %v278, %v243
        %v361 = vmul.f32 %v282, %v243
        %v362 = vmul.f32 %v286, %v243
        %v363 = vmul.f32 %v290, %v243
        %v364 = vadd.f32 %v348, %v356
        %v365 = vadd.f32 %v349, %v357
        %v366 = vadd.f32 %v350, %v358
        %v367 = vadd.f32 %v351, %v359
        %v368 = vadd.f32 %v352, %v360
        %v369 = vadd.f32 %v353, %v361
        %v370 = vadd.f32 %v354, %v362
        %v371 = vadd.f32 %v355, %v363
        %372 = vset.pattern.permute.xlu0 3
        %373 = vperm.xlu0 %372, %v144
        %v374 = vpop.permute.xlu0 %373
        %376 = vset.pattern.permute.xlu0 3
        %377 = vperm.xlu0 %376, %v145
        %v378 = vpop.permute.xlu0 %377
        %380 = vset.pattern.permute.xlu0 3
        %381 = vperm.xlu0 %380, %v146
        %v382 = vpop.permute.xlu0 %381
        %384 = vset.pattern.permute.xlu0 3
        %385 = vperm.xlu0 %384, %v147
        %v386 = vpop.permute.xlu0 %385
        %388 = vset.pattern.permute.xlu0 3
        %389 = vperm.xlu0 %388, %v148
        %v390 = vpop.permute.xlu0 %389
        %392 = vset.pattern.permute.xlu0 3
        %393 = vperm.xlu0 %392, %v149
        %v394 = vpop.permute.xlu0 %393
        %396 = vset.pattern.permute.xlu0 3
        %397 = vperm.xlu0 %396, %v150
        %v398 = vpop.permute.xlu0 %397
        %400 = vset.pattern.permute.xlu0 3
        %401 = vperm.xlu0 %400, %v151
        %v402 = vpop.permute.xlu0 %401
        %v404 = vmul.f32 %v374, %v295
        %v405 = vmul.f32 %v378, %v295
        %v406 = vmul.f32 %v382, %v295
        %v407 = vmul.f32 %v386, %v295
        %v408 = vmul.f32 %v390, %v295
        %v409 = vmul.f32 %v394, %v295
        %v410 = vmul.f32 %v398, %v295
        %v411 = vmul.f32 %v402, %v295
        %v412 = vadd.f32 %v364, %v404
        %v413 = vadd.f32 %v365, %v405
        %v414 = vadd.f32 %v366, %v406
        %v415 = vadd.f32 %v367, %v407
        %v416 = vadd.f32 %v368, %v408
        %v417 = vadd.f32 %v369, %v409
        %v418 = vadd.f32 %v370, %v410
        %v419 = vadd.f32 %v371, %v411
        %v420 = vadd.f32 %v412, %v315
        %v421 = vadd.f32 %v413, %v315
        %v422 = vadd.f32 %v414, %v315
        %v423 = vadd.f32 %v415, %v315
        %v424 = vadd.f32 %v416, %v315
        %v425 = vadd.f32 %v417, %v315
        %v426 = vadd.f32 %v418, %v315
        %v427 = vadd.f32 %v419, %v315
        %vm428 = vcmp.gt.f32.partialorder %v420, 0.0
        %vm429 = vcmp.gt.f32.partialorder %v421, 0.0
        %vm430 = vcmp.gt.f32.partialorder %v422, 0.0
        %vm431 = vcmp.gt.f32.partialorder %v423, 0.0
        %vm432 = vcmp.gt.f32.partialorder %v424, 0.0
        %vm433 = vcmp.gt.f32.partialorder %v425, 0.0
        %vm434 = vcmp.gt.f32.partialorder %v426, 0.0
        %vm435 = vcmp.gt.f32.partialorder %v427, 0.0
        %v436 = vmul.f32 %v420, 0.9
        %v437 = vmul.f32 %v421, 0.9
        %v438 = vmul.f32 %v422, 0.9
        %v439 = vmul.f32 %v423, 0.9
        %v440 = vmul.f32 %v424, 0.9
        %v441 = vmul.f32 %v425, 0.9
        %v442 = vmul.f32 %v426, 0.9
        %v443 = vmul.f32 %v427, 0.9
        %v444 = vsel %vm428, %v420, %v436
        %v445 = vsel %vm429, %v421, %v437
        %v446 = vsel %vm430, %v422, %v438
        %v447 = vsel %vm431, %v423, %v439
        %v448 = vsel %vm432, %v424, %v440
        %v449 = vsel %vm433, %v425, %v441
        %v450 = vsel %vm434, %v426, %v442
        %v451 = vsel %vm435, %v427, %v443
        %v452 = vmax.f32 %v340, %v444
        %v453 = vmax.f32 %v341, %v445
        %v454 = vmax.f32 %v342, %v446
        %v455 = vmax.f32 %v343, %v447
        %v456 = vmax.f32 %v344, %v448
        %v457 = vmax.f32 %v345, %v449
        %v458 = vmax.f32 %v346, %v450
        %v459 = vmax.f32 %v347, %v451
        %vm460 = vcmask 64512
        %461 = vst.msk [vmem:[#allocation2 + $0x8] sm:$0xff] %vm460, %v452
        %462 = vst.msk [vmem:[#allocation2 + $0x10] sm:$0xff] %vm460, %v453
        %463 = vst.msk [vmem:[#allocation2 + $0x18] sm:$0xff] %vm460, %v454
        %464 = vst.msk [vmem:[#allocation2 + $0x20] sm:$0xff] %vm460, %v455
        %465 = vst.msk [vmem:[#allocation2 + $0x28] sm:$0xff] %vm460, %v456
        %466 = vst.msk [vmem:[#allocation2 + $0x30] sm:$0xff] %vm460, %v457
        %467 = vst.msk [vmem:[#allocation2 + $0x38] sm:$0xff] %vm460, %v458
        %468 = vst.msk [vmem:[#allocation2 + $0x40] sm:$0xff] %vm460, %v459
        %v469 = vld [vmem:[#allocation2 + $0x7] sm:$0xff]
        %v470 = vld [vmem:[#allocation2 + $0xf] sm:$0xff]
        %v471 = vld [vmem:[#allocation2 + $0x17] sm:$0xff]
        %v472 = vld [vmem:[#allocation2 + $0x1f] sm:$0xff]
        %v473 = vld [vmem:[#allocation2 + $0x27] sm:$0xff]
        %v474 = vld [vmem:[#allocation2 + $0x2f] sm:$0xff]
        %v475 = vld [vmem:[#allocation2 + $0x37] sm:$0xff]
        %v476 = vld [vmem:[#allocation2 + $0x3f] sm:$0xff]
        %v477 = vld [vmem:[#allocation2 + $0x9] sm:$0xff]
        %v478 = vld [vmem:[#allocation2 + $0x11] sm:$0xff]
        %v479 = vld [vmem:[#allocation2 + $0x19] sm:$0xff]
        %v480 = vld [vmem:[#allocation2 + $0x21] sm:$0xff]
        %v481 = vld [vmem:[#allocation2 + $0x29] sm:$0xff]
        %v482 = vld [vmem:[#allocation2 + $0x31] sm:$0xff]
        %v483 = vld [vmem:[#allocation2 + $0x39] sm:$0xff]
        %v484 = vld [vmem:[#allocation2 + $0x41] sm:$0xff]
        %v485 = vlaneseq
        %v486 = vshrl.u32 %v485, 7
        %v487 = vadd.s32 %v486, 8
        %v488 = vadd.s32 %v486, 16
        %v489 = vadd.s32 %v486, 24
        %v490 = vadd.s32 %v486, 32
        %v491 = vadd.s32 %v486, 40
        %v492 = vadd.s32 %v486, 48
        %v493 = vadd.s32 %v486, 56
        %vm494 = vcmp.lt.s32.totalorder %v486, 0
        %v495 = vsub.s32 0, %v486
        %v496 = vsel %vm494, %v495, %v486
        %v497 = vshrl.u32 %v496, 3
        %v498 = vand.u32 %v496, 7
        %v499 = vsub.s32 0, %v498
        %v500 = vsel %vm494, %v499, %v498
        %vm501 = vcmp.lt.s32.totalorder %v487, 0
        %v502 = vsub.s32 0, %v487
        %v503 = vsel %vm501, %v502, %v487
        %v504 = vshrl.u32 %v503, 3
        %v505 = vand.u32 %v503, 7
        %v506 = vsub.s32 0, %v505
        %v507 = vsel %vm501, %v506, %v505
        %vm508 = vcmp.lt.s32.totalorder %v488, 0
        %v509 = vsub.s32 0, %v488
        %v510 = vsel %vm508, %v509, %v488
        %v511 = vshrl.u32 %v510, 3
        %v512 = vand.u32 %v510, 7
        %v513 = vsub.s32 0, %v512
        %v514 = vsel %vm508, %v513, %v512
        %vm515 = vcmp.lt.s32.totalorder %v489, 0
        %v516 = vsub.s32 0, %v489
        %v517 = vsel %vm515, %v516, %v489
        %v518 = vshrl.u32 %v517, 3
        %v519 = vand.u32 %v517, 7
        %v520 = vsub.s32 0, %v519
        %v521 = vsel %vm515, %v520, %v519
        %vm522 = vcmp.lt.s32.totalorder %v490, 0
        %v523 = vsub.s32 0, %v490
        %v524 = vsel %vm522, %v523, %v490
        %v525 = vshrl.u32 %v524, 3
        %v526 = vand.u32 %v524, 7
        %v527 = vsub.s32 0, %v526
        %v528 = vsel %vm522, %v527, %v526
        %vm529 = vcmp.lt.s32.totalorder %v491, 0
        %v530 = vsub.s32 0, %v491
        %v531 = vsel %vm529, %v530, %v491
        %v532 = vshrl.u32 %v531, 3
        %v533 = vand.u32 %v531, 7
        %v534 = vsub.s32 0, %v533
        %v535 = vsel %vm529, %v534, %v533
        %vm536 = vcmp.lt.s32.totalorder %v492, 0
        %v537 = vsub.s32 0, %v492
        %v538 = vsel %vm536, %v537, %v492
        %v539 = vshrl.u32 %v538, 3
        %v540 = vand.u32 %v538, 7
        %v541 = vsub.s32 0, %v540
        %v542 = vsel %vm536, %v541, %v540
        %vm543 = vcmp.lt.s32.totalorder %v493, 0
        %v544 = vsub.s32 0, %v493
        %v545 = vsel %vm543, %v544, %v493
        %v546 = vshrl.u32 %v545, 3
        %v547 = vand.u32 %v545, 7
        %v548 = vsub.s32 0, %v547
        %v549 = vsel %vm543, %v548, %v547
        %vm550 = vcmp.ne.s32.totalorder %v500, 0
        %vm551 = vcmp.ne.s32.totalorder %v507, 0
        %vm552 = vcmp.ne.s32.totalorder %v514, 0
        %vm553 = vcmp.ne.s32.totalorder %v521, 0
        %vm554 = vcmp.ne.s32.totalorder %v528, 0
        %vm555 = vcmp.ne.s32.totalorder %v535, 0
        %vm556 = vcmp.ne.s32.totalorder %v542, 0
        %vm557 = vcmp.ne.s32.totalorder %v549, 0
        %vm558 = vcmp.lt.s32.totalorder %v500, 0
        %vm559 = vcmp.lt.s32.totalorder %v507, 0
        %vm560 = vcmp.lt.s32.totalorder %v514, 0
        %vm561 = vcmp.lt.s32.totalorder %v521, 0
        %vm562 = vcmp.lt.s32.totalorder %v528, 0
        %vm563 = vcmp.lt.s32.totalorder %v535, 0
        %vm564 = vcmp.lt.s32.totalorder %v542, 0
        %vm565 = vcmp.lt.s32.totalorder %v549, 0
        %vm566 = vmand %vm558, %vm550
        %vm567 = vmand %vm559, %vm551
        %vm568 = vmand %vm560, %vm552
        %vm569 = vmand %vm561, %vm553
        %vm570 = vmand %vm562, %vm554
        %vm571 = vmand %vm563, %vm555
        %vm572 = vmand %vm564, %vm556
        %vm573 = vmand %vm565, %vm557
        %v574 = vadd.s32 %v500, 8
        %v575 = vadd.s32 %v507, 8
        %v576 = vadd.s32 %v514, 8
        %v577 = vadd.s32 %v521, 8
        %v578 = vadd.s32 %v528, 8
        %v579 = vadd.s32 %v535, 8
        %v580 = vadd.s32 %v542, 8
        %v581 = vadd.s32 %v549, 8
        %v582 = vsel %vm566, %v574, %v500
        %v583 = vsel %vm567, %v575, %v507
        %v584 = vsel %vm568, %v576, %v514
        %v585 = vsel %vm569, %v577, %v521
        %v586 = vsel %vm570, %v578, %v528
        %v587 = vsel %vm571, %v579, %v535
        %v588 = vsel %vm572, %v580, %v542
        %v589 = vsel %vm573, %v581, %v549
        %vm590 = vcmp.eq.s32.totalorder %v582, 0
        %vm591 = vcmp.eq.s32.totalorder %v583, 0
        %vm592 = vcmp.eq.s32.totalorder %v584, 0
        %vm593 = vcmp.eq.s32.totalorder %v585, 0
        %vm594 = vcmp.eq.s32.totalorder %v586, 0
        %vm595 = vcmp.eq.s32.totalorder %v587, 0
        %vm596 = vcmp.eq.s32.totalorder %v588, 0
        %vm597 = vcmp.eq.s32.totalorder %v589, 0
        %v598 = vsel %vm590, 1, 0
        %v599 = vsel %vm591, 1, 0
        %v600 = vsel %vm592, 1, 0
        %v601 = vsel %vm593, 1, 0
        %v602 = vsel %vm594, 1, 0
        %v603 = vsel %vm595, 1, 0
        %v604 = vsel %vm596, 1, 0
        %v605 = vsel %vm597, 1, 0
        %vm606 = vcmp.eq.s32.totalorder %v598, 1
        %vm607 = vcmp.eq.s32.totalorder %v599, 1
        %vm608 = vcmp.eq.s32.totalorder %v600, 1
        %vm609 = vcmp.eq.s32.totalorder %v601, 1
        %vm610 = vcmp.eq.s32.totalorder %v602, 1
        %vm611 = vcmp.eq.s32.totalorder %v603, 1
        %vm612 = vcmp.eq.s32.totalorder %v604, 1
        %vm613 = vcmp.eq.s32.totalorder %v605, 1
        %v614 = vsel %vm606, 0.0, %v469
        %v615 = vsel %vm607, 0.0, %v470
        %v616 = vsel %vm608, 0.0, %v471
        %v617 = vsel %vm609, 0.0, %v472
        %v618 = vsel %vm610, 0.0, %v473
        %v619 = vsel %vm611, 0.0, %v474
        %v620 = vsel %vm612, 0.0, %v475
        %v621 = vsel %vm613, 0.0, %v476
        %vm622 = vcmp.eq.s32.totalorder %v582, 7
        %vm623 = vcmp.eq.s32.totalorder %v583, 7
        %vm624 = vcmp.eq.s32.totalorder %v584, 7
        %vm625 = vcmp.eq.s32.totalorder %v585, 7
        %vm626 = vcmp.eq.s32.totalorder %v586, 7
        %vm627 = vcmp.eq.s32.totalorder %v587, 7
        %vm628 = vcmp.eq.s32.totalorder %v588, 7
        %vm629 = vcmp.eq.s32.totalorder %v589, 7
        %v630 = vsel %vm622, 1, 0
        %v631 = vsel %vm623, 1, 0
        %v632 = vsel %vm624, 1, 0
        %v633 = vsel %vm625, 1, 0
        %v634 = vsel %vm626, 1, 0
        %v635 = vsel %vm627, 1, 0
        %v636 = vsel %vm628, 1, 0
        %v637 = vsel %vm629, 1, 0
        %vm638 = vcmp.eq.s32.totalorder %v630, 1
        %vm639 = vcmp.eq.s32.totalorder %v631, 1
        %vm640 = vcmp.eq.s32.totalorder %v632, 1
        %vm641 = vcmp.eq.s32.totalorder %v633, 1
        %vm642 = vcmp.eq.s32.totalorder %v634, 1
        %vm643 = vcmp.eq.s32.totalorder %v635, 1
        %vm644 = vcmp.eq.s32.totalorder %v636, 1
        %vm645 = vcmp.eq.s32.totalorder %v637, 1
        %v646 = vsel %vm638, 0.0, %v477
        %v647 = vsel %vm639, 0.0, %v478
        %v648 = vsel %vm640, 0.0, %v479
        %v649 = vsel %vm641, 0.0, %v480
        %v650 = vsel %vm642, 0.0, %v481
        %v651 = vsel %vm643, 0.0, %v482
        %v652 = vsel %vm644, 0.0, %v483
        %v653 = vsel %vm645, 0.0, %v484
        %v654 = vld [vmem:[%s1 + $0x4] sm:$0xff]
        %v655 = vld [vmem:[%s1 + $0xc] sm:$0xff]
        %v657 = vsel %vm460, %v452, 0
        %v660 = vsel %vm460, %v453, 0
        %v663 = vsel %vm460, %v454, 0
        %v666 = vsel %vm460, %v455, 0
        %v669 = vsel %vm460, %v456, 0
        %v672 = vsel %vm460, %v457, 0
        %v675 = vsel %vm460, %v458, 0
        %v678 = vsel %vm460, %v459, 0
        %680 = vmatprep.subr.mxu0 0.0
        %681 = vmatpush1.msra.mxu0 %v655
        %682 = vmatprep.subr.mxu0 0.0
        %683 = vmatpush1.msra.mxu0 0.0
        %684 = vmatprep.subr.mxu0 0.0
        %685 = vmatpush1.msra.mxu0 0.0
        %686 = vmatprep.subr.mxu0 0.0
        %687 = vmatpush1.msra.mxu0 0.0
        %688 = vmatprep.subr.mxu0 0.0
        %689 = vmatpush1.msra.mxu0 0.0
        %690 = vmatprep.subr.mxu0 0.0
        %691 = vmatpush1.msra.mxu0 0.0
        %692 = vmatprep.subr.mxu0 0.0
        %693 = vmatpush1.msra.mxu0 0.0
        %694 = vmatprep.subr.mxu0 0.0
        %695 = vmatpush1.msra.mxu0 0.0
        %696 = vmatprep.subr.mxu0 0.0
        %697 = vmatpush1.msra.mxu0 0.0
        %698 = vmatprep.subr.mxu0 0.0
        %699 = vmatpush1.msra.mxu0 0.0
        %700 = vmatprep.subr.mxu0 0.0
        %701 = vmatpush1.msra.mxu0 0.0
        %702 = vmatprep.subr.mxu0 0.0
        %703 = vmatpush1.msra.mxu0 0.0
        %704 = vmatprep.subr.mxu0 0.0
        %705 = vmatpush1.msra.mxu0 0.0
        %706 = vmatprep.subr.mxu0 0.0
        %707 = vmatpush1.msra.mxu0 0.0
        %708 = vmatprep.subr.mxu0 0.0
        %709 = vmatpush1.msra.mxu0 0.0
        %710 = vmatprep.subr.mxu0 0.0
        %711 = vmatpush1.msra.mxu0 0.0
        %712 = vmatprep.subr.mxu0 0.0
        %713 = vmatpush1.msra.mxu0 0.0
        %714 = vmatprep.subr.mxu0 0.0
        %715 = vmatpush1.msra.mxu0 0.0
        %716 = vmatprep.subr.mxu0 0.0
        %717 = vmatpush1.msra.mxu0 0.0
        %718 = vmatprep.subr.mxu0 0.0
        %719 = vmatpush1.msra.mxu0 0.0
        %720 = vmatprep.subr.mxu0 0.0
        %721 = vmatpush1.msra.mxu0 0.0
        %722 = vmatprep.subr.mxu0 0.0
        %723 = vmatpush1.msra.mxu0 0.0
        %724 = vmatprep.subr.mxu0 0.0
        %725 = vmatpush1.msra.mxu0 0.0
        %726 = vmatprep.subr.mxu0 0.0
        %727 = vmatpush1.msra.mxu0 0.0
        %728 = vmatprep.subr.mxu0 0.0
        %729 = vmatpush1.msra.mxu0 0.0
        %730 = vmatprep.subr.mxu0 0.0
        %731 = vmatpush1.msra.mxu0 0.0
        %732 = vmatprep.subr.mxu0 0.0
        %733 = vmatpush1.msra.mxu0 0.0
        %734 = vmatprep.subr.mxu0 0.0
        %735 = vmatpush1.msra.mxu0 0.0
        %736 = vmatprep.subr.mxu0 0.0
        %737 = vmatpush1.msra.mxu0 0.0
        %738 = vmatprep.subr.mxu0 0.0
        %739 = vmatpush1.msra.mxu0 0.0
        %740 = vmatprep.subr.mxu0 0.0
        %741 = vmatpush1.msra.mxu0 0.0
        %742 = vmatprep.subr.mxu0 0.0
        %743 = vmatpush1.msra.mxu0 0.0
        %744 = vmatprep.mubr.f32.mxu0 0.0
        %745 = vmatmul.mubr.f32.gmra.mrb[0].mxu0 %v657
        %v746 = vpop.f32.mrb[0].mxu0
        %v747 = vadd.f32 0.0, %v746
        %v748 = vpop.f32.mrb[0].mxu0
        %749 = vmatprep.mubr.f32.mxu0 0.0
        %750 = vmatmul.mubr.f32.gmra.mrb[0].mxu0 %v660
        %v751 = vpop.f32.mrb[0].mxu0
        %v752 = vadd.f32 0.0, %v751
        %v753 = vpop.f32.mrb[0].mxu0
        %754 = vmatprep.mubr.f32.mxu0 0.0
        %755 = vmatmul.mubr.f32.gmra.mrb[0].mxu0 %v663
        %v756 = vpop.f32.mrb[0].mxu0
        %v757 = vadd.f32 0.0, %v756
        %v758 = vpop.f32.mrb[0].mxu0
        %759 = vmatprep.mubr.f32.mxu0 0.0
        %760 = vmatmul.mubr.f32.gmra.mrb[0].mxu0 %v666
        %v761 = vpop.f32.mrb[0].mxu0
        %v762 = vadd.f32 0.0, %v761
        %v763 = vpop.f32.mrb[0].mxu0
        %764 = vmatprep.mubr.f32.mxu0 0.0
        %765 = vmatmul.mubr.f32.gmra.mrb[0].mxu0 %v669
        %v766 = vpop.f32.mrb[0].mxu0
        %v767 = vadd.f32 0.0, %v766
        %v768 = vpop.f32.mrb[0].mxu0
        %769 = vmatprep.mubr.f32.mxu0 0.0
        %770 = vmatmul.mubr.f32.gmra.mrb[0].mxu0 %v672
        %v771 = vpop.f32.mrb[0].mxu0
        %v772 = vadd.f32 0.0, %v771
        %v773 = vpop.f32.mrb[0].mxu0
        %774 = vmatprep.mubr.f32.mxu0 0.0
        %775 = vmatmul.mubr.f32.gmra.mrb[0].mxu0 %v675
        %v776 = vpop.f32.mrb[0].mxu0
        %v777 = vadd.f32 0.0, %v776
        %v778 = vpop.f32.mrb[0].mxu0
        %779 = vmatprep.mubr.f32.mxu0 0.0
        %780 = vmatmul.mubr.f32.gmra.mrb[0].mxu0 %v678
        %v781 = vpop.f32.mrb[0].mxu0
        %v782 = vadd.f32 0.0, %v781
        %v783 = vpop.f32.mrb[0].mxu0
        %784 = vdwg.mxu0
        %v786 = vsel %vm460, %v614, 0
        %v789 = vsel %vm460, %v615, 0
        %v792 = vsel %vm460, %v616, 0
        %v795 = vsel %vm460, %v617, 0
        %v798 = vsel %vm460, %v618, 0
        %v801 = vsel %vm460, %v619, 0
        %v804 = vsel %vm460, %v620, 0
        %v807 = vsel %vm460, %v621, 0
        %809 = vmatprep.subr.mxu0 0.0
        %810 = vmatpush1.msra.mxu0 %v654
        %811 = vmatprep.subr.mxu0 0.0
        %812 = vmatpush1.msra.mxu0 0.0
        %813 = vmatprep.subr.mxu0 0.0
        %814 = vmatpush1.msra.mxu0 0.0
        %815 = vmatprep.subr.mxu0 0.0
        %816 = vmatpush1.msra.mxu0 0.0
        %817 = vmatprep.subr.mxu0 0.0
        %818 = vmatpush1.msra.mxu0 0.0
        %819 = vmatprep.subr.mxu0 0.0
        %820 = vmatpush1.msra.mxu0 0.0
        %821 = vmatprep.subr.mxu0 0.0
        %822 = vmatpush1.msra.mxu0 0.0
        %823 = vmatprep.subr.mxu0 0.0
        %824 = vmatpush1.msra.mxu0 0.0
        %825 = vmatprep.subr.mxu0 0.0
        %826 = vmatpush1.msra.mxu0 0.0
        %827 = vmatprep.subr.mxu0 0.0
        %828 = vmatpush1.msra.mxu0 0.0
        %829 = vmatprep.subr.mxu0 0.0
        %830 = vmatpush1.msra.mxu0 0.0
        %831 = vmatprep.subr.mxu0 0.0
        %832 = vmatpush1.msra.mxu0 0.0
        %833 = vmatprep.subr.mxu0 0.0
        %834 = vmatpush1.msra.mxu0 0.0
        %835 = vmatprep.subr.mxu0 0.0
        %836 = vmatpush1.msra.mxu0 0.0
        %837 = vmatprep.subr.mxu0 0.0
        %838 = vmatpush1.msra.mxu0 0.0
        %839 = vmatprep.subr.mxu0 0.0
        %840 = vmatpush1.msra.mxu0 0.0
        %841 = vmatprep.subr.mxu0 0.0
        %842 = vmatpush1.msra.mxu0 0.0
        %843 = vmatprep.subr.mxu0 0.0
        %844 = vmatpush1.msra.mxu0 0.0
        %845 = vmatprep.subr.mxu0 0.0
        %846 = vmatpush1.msra.mxu0 0.0
        %847 = vmatprep.subr.mxu0 0.0
        %848 = vmatpush1.msra.mxu0 0.0
        %849 = vmatprep.subr.mxu0 0.0
        %850 = vmatpush1.msra.mxu0 0.0
        %851 = vmatprep.subr.mxu0 0.0
        %852 = vmatpush1.msra.mxu0 0.0
        %853 = vmatprep.subr.mxu0 0.0
        %854 = vmatpush1.msra.mxu0 0.0
        %855 = vmatprep.subr.mxu0 0.0
        %856 = vmatpush1.msra.mxu0 0.0
        %857 = vmatprep.subr.mxu0 0.0
        %858 = vmatpush1.msra.mxu0 0.0
        %859 = vmatprep.subr.mxu0 0.0
        %860 = vmatpush1.msra.mxu0 0.0
        %861 = vmatprep.subr.mxu0 0.0
        %862 = vmatpush1.msra.mxu0 0.0
        %863 = vmatprep.subr.mxu0 0.0
        %864 = vmatpush1.msra.mxu0 0.0
        %865 = vmatprep.subr.mxu0 0.0
        %866 = vmatpush1.msra.mxu0 0.0
        %867 = vmatprep.subr.mxu0 0.0
        %868 = vmatpush1.msra.mxu0 0.0
        %869 = vmatprep.subr.mxu0 0.0
        %870 = vmatpush1.msra.mxu0 0.0
        %871 = vmatprep.subr.mxu0 0.0
        %872 = vmatpush1.msra.mxu0 0.0
        %873 = vmatprep.mubr.f32.mxu0 0.0
        %874 = vmatmul.mubr.f32.gmra.mrb[0].mxu0 %v786
        %v875 = vpop.f32.mrb[0].mxu0
        %v876 = vadd.f32 %v747, %v875
        %v877 = vpop.f32.mrb[0].mxu0
        %878 = vmatprep.mubr.f32.mxu0 0.0
        %879 = vmatmul.mubr.f32.gmra.mrb[0].mxu0 %v789
        %v880 = vpop.f32.mrb[0].mxu0
        %v881 = vadd.f32 %v752, %v880
        %v882 = vpop.f32.mrb[0].mxu0
        %883 = vmatprep.mubr.f32.mxu0 0.0
        %884 = vmatmul.mubr.f32.gmra.mrb[0].mxu0 %v792
        %v885 = vpop.f32.mrb[0].mxu0
        %v886 = vadd.f32 %v757, %v885
        %v887 = vpop.f32.mrb[0].mxu0
        %888 = vmatprep.mubr.f32.mxu0 0.0
        %889 = vmatmul.mubr.f32.gmra.mrb[0].mxu0 %v795
        %v890 = vpop.f32.mrb[0].mxu0
        %v891 = vadd.f32 %v762, %v890
        %v892 = vpop.f32.mrb[0].mxu0
        %893 = vmatprep.mubr.f32.mxu0 0.0
        %894 = vmatmul.mubr.f32.gmra.mrb[0].mxu0 %v798
        %v895 = vpop.f32.mrb[0].mxu0
        %v896 = vadd.f32 %v767, %v895
        %v897 = vpop.f32.mrb[0].mxu0
        %898 = vmatprep.mubr.f32.mxu0 0.0
        %899 = vmatmul.mubr.f32.gmra.mrb[0].mxu0 %v801
        %v900 = vpop.f32.mrb[0].mxu0
        %v901 = vadd.f32 %v772, %v900
        %v902 = vpop.f32.mrb[0].mxu0
        %903 = vmatprep.mubr.f32.mxu0 0.0
        %904 = vmatmul.mubr.f32.gmra.mrb[0].mxu0 %v804
        %v905 = vpop.f32.mrb[0].mxu0
        %v906 = vadd.f32 %v777, %v905
        %v907 = vpop.f32.mrb[0].mxu0
        %908 = vmatprep.mubr.f32.mxu0 0.0
        %909 = vmatmul.mubr.f32.gmra.mrb[0].mxu0 %v807
        %v910 = vpop.f32.mrb[0].mxu0
        %v911 = vadd.f32 %v782, %v910
        %v912 = vpop.f32.mrb[0].mxu0
        %913 = vdwg.mxu0
        %v914 = vld [vmem:[%s1 + $0x14] sm:$0xff]
        %v916 = vsel %vm460, %v646, 0
        %v919 = vsel %vm460, %v647, 0
        %v922 = vsel %vm460, %v648, 0
        %v925 = vsel %vm460, %v649, 0
        %v928 = vsel %vm460, %v650, 0
        %v931 = vsel %vm460, %v651, 0
        %v934 = vsel %vm460, %v652, 0
        %v937 = vsel %vm460, %v653, 0
        %939 = vmatprep.subr.mxu0 0.0
        %940 = vmatpush1.msra.mxu0 %v914
        %941 = vmatprep.subr.mxu0 0.0
        %942 = vmatpush1.msra.mxu0 0.0
        %943 = vmatprep.subr.mxu0 0.0
        %944 = vmatpush1.msra.mxu0 0.0
        %945 = vmatprep.subr.mxu0 0.0
        %946 = vmatpush1.msra.mxu0 0.0
        %947 = vmatprep.subr.mxu0 0.0
        %948 = vmatpush1.msra.mxu0 0.0
        %949 = vmatprep.subr.mxu0 0.0
        %950 = vmatpush1.msra.mxu0 0.0
        %951 = vmatprep.subr.mxu0 0.0
        %952 = vmatpush1.msra.mxu0 0.0
        %953 = vmatprep.subr.mxu0 0.0
        %954 = vmatpush1.msra.mxu0 0.0
        %955 = vmatprep.subr.mxu0 0.0
        %956 = vmatpush1.msra.mxu0 0.0
        %957 = vmatprep.subr.mxu0 0.0
        %958 = vmatpush1.msra.mxu0 0.0
        %959 = vmatprep.subr.mxu0 0.0
        %960 = vmatpush1.msra.mxu0 0.0
        %961 = vmatprep.subr.mxu0 0.0
        %962 = vmatpush1.msra.mxu0 0.0
        %963 = vmatprep.subr.mxu0 0.0
        %964 = vmatpush1.msra.mxu0 0.0
        %965 = vmatprep.subr.mxu0 0.0
        %966 = vmatpush1.msra.mxu0 0.0
        %967 = vmatprep.subr.mxu0 0.0
        %968 = vmatpush1.msra.mxu0 0.0
        %969 = vmatprep.subr.mxu0 0.0
        %970 = vmatpush1.msra.mxu0 0.0
        %971 = vmatprep.subr.mxu0 0.0
        %972 = vmatpush1.msra.mxu0 0.0
        %973 = vmatprep.subr.mxu0 0.0
        %974 = vmatpush1.msra.mxu0 0.0
        %975 = vmatprep.subr.mxu0 0.0
        %976 = vmatpush1.msra.mxu0 0.0
        %977 = vmatprep.subr.mxu0 0.0
        %978 = vmatpush1.msra.mxu0 0.0
        %979 = vmatprep.subr.mxu0 0.0
        %980 = vmatpush1.msra.mxu0 0.0
        %981 = vmatprep.subr.mxu0 0.0
        %982 = vmatpush1.msra.mxu0 0.0
        %983 = vmatprep.subr.mxu0 0.0
        %984 = vmatpush1.msra.mxu0 0.0
        %985 = vmatprep.subr.mxu0 0.0
        %986 = vmatpush1.msra.mxu0 0.0
        %987 = vmatprep.subr.mxu0 0.0
        %988 = vmatpush1.msra.mxu0 0.0
        %989 = vmatprep.subr.mxu0 0.0
        %990 = vmatpush1.msra.mxu0 0.0
        %991 = vmatprep.subr.mxu0 0.0
        %992 = vmatpush1.msra.mxu0 0.0
        %993 = vmatprep.subr.mxu0 0.0
        %994 = vmatpush1.msra.mxu0 0.0
        %995 = vmatprep.subr.mxu0 0.0
        %996 = vmatpush1.msra.mxu0 0.0
        %997 = vmatprep.subr.mxu0 0.0
        %998 = vmatpush1.msra.mxu0 0.0
        %999 = vmatprep.subr.mxu0 0.0
        %1000 = vmatpush1.msra.mxu0 0.0
        %1001 = vmatprep.subr.mxu0 0.0
        %1002 = vmatpush1.msra.mxu0 0.0
        %1003 = vmatprep.mubr.f32.mxu0 0.0
        %1004 = vmatmul.mubr.f32.gmra.mrb[0].mxu0 %v916
        %v1005 = vpop.f32.mrb[0].mxu0
        %v1006 = vadd.f32 0.0, %v1005
        %v1007 = vpop.f32.mrb[0].mxu0
        %1008 = vmatprep.mubr.f32.mxu0 0.0
        %1009 = vmatmul.mubr.f32.gmra.mrb[0].mxu0 %v919
        %v1010 = vpop.f32.mrb[0].mxu0
        %v1011 = vadd.f32 0.0, %v1010
        %v1012 = vpop.f32.mrb[0].mxu0
        %1013 = vmatprep.mubr.f32.mxu0 0.0
        %1014 = vmatmul.mubr.f32.gmra.mrb[0].mxu0 %v922
        %v1015 = vpop.f32.mrb[0].mxu0
        %v1016 = vadd.f32 0.0, %v1015
        %v1017 = vpop.f32.mrb[0].mxu0
        %1018 = vmatprep.mubr.f32.mxu0 0.0
        %1019 = vmatmul.mubr.f32.gmra.mrb[0].mxu0 %v925
        %v1020 = vpop.f32.mrb[0].mxu0
        %v1021 = vadd.f32 0.0, %v1020
        %v1022 = vpop.f32.mrb[0].mxu0
        %1023 = vmatprep.mubr.f32.mxu0 0.0
        %1024 = vmatmul.mubr.f32.gmra.mrb[0].mxu0 %v928
        %v1025 = vpop.f32.mrb[0].mxu0
        %v1026 = vadd.f32 0.0, %v1025
        %v1027 = vpop.f32.mrb[0].mxu0
        %1028 = vmatprep.mubr.f32.mxu0 0.0
        %1029 = vmatmul.mubr.f32.gmra.mrb[0].mxu0 %v931
        %v1030 = vpop.f32.mrb[0].mxu0
        %v1031 = vadd.f32 0.0, %v1030
        %v1032 = vpop.f32.mrb[0].mxu0
        %1033 = vmatprep.mubr.f32.mxu0 0.0
        %1034 = vmatmul.mubr.f32.gmra.mrb[0].mxu0 %v934
        %v1035 = vpop.f32.mrb[0].mxu0
        %v1036 = vadd.f32 0.0, %v1035
        %v1037 = vpop.f32.mrb[0].mxu0
        %1038 = vmatprep.mubr.f32.mxu0 0.0
        %1039 = vmatmul.mubr.f32.gmra.mrb[0].mxu0 %v937
        %v1040 = vpop.f32.mrb[0].mxu0
        %v1041 = vadd.f32 0.0, %v1040
        %v1042 = vpop.f32.mrb[0].mxu0
        %1043 = vdwg.mxu0
        %v1044 = vadd.f32 %v876, %v1006
        %v1045 = vadd.f32 %v881, %v1011
        %v1046 = vadd.f32 %v886, %v1016
        %v1047 = vadd.f32 %v891, %v1021
        %v1048 = vadd.f32 %v896, %v1026
        %v1049 = vadd.f32 %v901, %v1031
        %v1050 = vadd.f32 %v906, %v1036
        %v1051 = vadd.f32 %v911, %v1041
        %v1052 = vld [vmem:[%s1 + $0x1c] sm:$0x1]
        %v1053 = vlaneseq
        %v1054 = vshrl.u32 %v1053, 7
        %v1055 = vsub.s32 0, %v1054
        %v1056 = vrot.slane %v1052, %v1055
        %v1057 = vadd.f32 %v1044, %v1056
        %v1058 = vadd.f32 %v1045, %v1056
        %v1059 = vadd.f32 %v1046, %v1056
        %v1060 = vadd.f32 %v1047, %v1056
        %v1061 = vadd.f32 %v1048, %v1056
        %v1062 = vadd.f32 %v1049, %v1056
        %v1063 = vadd.f32 %v1050, %v1056
        %v1064 = vadd.f32 %v1051, %v1056
        %vm1065 = vcmp.gt.f32.partialorder %v1057, 0.0
        %vm1066 = vcmp.gt.f32.partialorder %v1058, 0.0
        %vm1067 = vcmp.gt.f32.partialorder %v1059, 0.0
        %vm1068 = vcmp.gt.f32.partialorder %v1060, 0.0
        %vm1069 = vcmp.gt.f32.partialorder %v1061, 0.0
        %vm1070 = vcmp.gt.f32.partialorder %v1062, 0.0
        %vm1071 = vcmp.gt.f32.partialorder %v1063, 0.0
        %vm1072 = vcmp.gt.f32.partialorder %v1064, 0.0
        %v1073 = vmul.f32 %v1057, 0.9
        %v1074 = vmul.f32 %v1058, 0.9
        %v1075 = vmul.f32 %v1059, 0.9
        %v1076 = vmul.f32 %v1060, 0.9
        %v1077 = vmul.f32 %v1061, 0.9
        %v1078 = vmul.f32 %v1062, 0.9
        %v1079 = vmul.f32 %v1063, 0.9
        %v1080 = vmul.f32 %v1064, 0.9
        %v1081 = vsel %vm1065, %v1057, %v1073
        %v1082 = vsel %vm1066, %v1058, %v1074
        %v1083 = vsel %vm1067, %v1059, %v1075
        %v1084 = vsel %vm1068, %v1060, %v1076
        %v1085 = vsel %vm1069, %v1061, %v1077
        %v1086 = vsel %vm1070, %v1062, %v1078
        %v1087 = vsel %vm1071, %v1063, %v1079
        %v1088 = vsel %vm1072, %v1064, %v1080
        %vm1089 = vcmask 130048
        %1090 = vst.msk [vmem:[#allocation3] sm:$0xff] %vm1089, %v1081
        %1091 = vst.msk [vmem:[#allocation3 + $0x8] sm:$0xff] %vm1089, %v1082
        %1092 = vst.msk [vmem:[#allocation3 + $0x10] sm:$0xff] %vm1089, %v1083
        %1093 = vst.msk [vmem:[#allocation3 + $0x18] sm:$0xff] %vm1089, %v1084
        %1094 = vst.msk [vmem:[#allocation3 + $0x20] sm:$0xff] %vm1089, %v1085
        %1095 = vst.msk [vmem:[#allocation3 + $0x28] sm:$0xff] %vm1089, %v1086
        %1096 = vst.msk [vmem:[#allocation3 + $0x30] sm:$0xff] %vm1089, %v1087
        %1097 = vst.msk [vmem:[#allocation3 + $0x38] sm:$0xff] %vm1089, %v1088
        %v1098 = vld [vmem:[#allocation3] ss:$8 sm:$0xf]
        %v1099 = vld [vmem:[#allocation3] ss:$8 sm:$0xf0]
        %v1100 = vor.u32 %v1098, %v1099
        %s1101 = scalar_lea.vmem [#allocation3], 1
        %v1102 = vld [vmem:[%s1101] ss:$8 sm:$0xf]
        %v1103 = vld [vmem:[%s1101] ss:$8 sm:$0xf0]
        %v1104 = vor.u32 %v1102, %v1103
        %v1105 = vmax.f32 %v1100, %v1104
        %v1106 = vld [vmem:[%s1 + $0x1d] sm:$0xff]
        %v1107 = vld [vmem:[%s1 + $0x25] sm:$0xff]
        %s1108 = scalar_lea.vmem [#allocation3], 2
        %v1109 = vld [vmem:[%s1108] ss:$8 sm:$0xf]
        %v1110 = vld [vmem:[%s1108] ss:$8 sm:$0xf0]
        %v1111 = vor.u32 %v1109, %v1110
        %s1112 = scalar_lea.vmem [#allocation3], 3
        %v1113 = vld [vmem:[%s1112] ss:$8 sm:$0xf]
        %v1114 = vld [vmem:[%s1112] ss:$8 sm:$0xf0]
        %v1115 = vor.u32 %v1113, %v1114
        %v1116 = vmax.f32 %v1111, %v1115
        %v1117 = vld [vmem:[%s1 + $0x2d] sm:$0xff]
        %v1118 = vld [vmem:[%s1 + $0x35] sm:$0xff]
        %v1120 = vsel %vm1089, %v1116, 0
        %1122 = vmatprep.subr.mxu0 0.0
        %1123 = vmatpush1.msra.mxu0 %v1117
        %1124 = vmatprep.subr.mxu0 0.0
        %1125 = vmatpush1.msra.mxu0 %v1118
        %1126 = vmatprep.subr.mxu0 0.0
        %1127 = vmatpush1.msra.mxu0 0.0
        %1128 = vmatprep.subr.mxu0 0.0
        %1129 = vmatpush1.msra.mxu0 0.0
        %1130 = vmatprep.subr.mxu0 0.0
        %1131 = vmatpush1.msra.mxu0 0.0
        %1132 = vmatprep.subr.mxu0 0.0
        %1133 = vmatpush1.msra.mxu0 0.0
        %1134 = vmatprep.subr.mxu0 0.0
        %1135 = vmatpush1.msra.mxu0 0.0
        %1136 = vmatprep.subr.mxu0 0.0
        %1137 = vmatpush1.msra.mxu0 0.0
        %1138 = vmatprep.subr.mxu0 0.0
        %1139 = vmatpush1.msra.mxu0 0.0
        %1140 = vmatprep.subr.mxu0 0.0
        %1141 = vmatpush1.msra.mxu0 0.0
        %1142 = vmatprep.subr.mxu0 0.0
        %1143 = vmatpush1.msra.mxu0 0.0
        %1144 = vmatprep.subr.mxu0 0.0
        %1145 = vmatpush1.msra.mxu0 0.0
        %1146 = vmatprep.subr.mxu0 0.0
        %1147 = vmatpush1.msra.mxu0 0.0
        %1148 = vmatprep.subr.mxu0 0.0
        %1149 = vmatpush1.msra.mxu0 0.0
        %1150 = vmatprep.subr.mxu0 0.0
        %1151 = vmatpush1.msra.mxu0 0.0
        %1152 = vmatprep.subr.mxu0 0.0
        %1153 = vmatpush1.msra.mxu0 0.0
        %1154 = vmatprep.subr.mxu0 0.0
        %1155 = vmatpush1.msra.mxu0 0.0
        %1156 = vmatprep.subr.mxu0 0.0
        %1157 = vmatpush1.msra.mxu0 0.0
        %1158 = vmatprep.subr.mxu0 0.0
        %1159 = vmatpush1.msra.mxu0 0.0
        %1160 = vmatprep.subr.mxu0 0.0
        %1161 = vmatpush1.msra.mxu0 0.0
        %1162 = vmatprep.subr.mxu0 0.0
        %1163 = vmatpush1.msra.mxu0 0.0
        %1164 = vmatprep.subr.mxu0 0.0
        %1165 = vmatpush1.msra.mxu0 0.0
        %1166 = vmatprep.subr.mxu0 0.0
        %1167 = vmatpush1.msra.mxu0 0.0
        %1168 = vmatprep.subr.mxu0 0.0
        %1169 = vmatpush1.msra.mxu0 0.0
        %1170 = vmatprep.subr.mxu0 0.0
        %1171 = vmatpush1.msra.mxu0 0.0
        %1172 = vmatprep.subr.mxu0 0.0
        %1173 = vmatpush1.msra.mxu0 0.0
        %1174 = vmatprep.subr.mxu0 0.0
        %1175 = vmatpush1.msra.mxu0 0.0
        %1176 = vmatprep.subr.mxu0 0.0
        %1177 = vmatpush1.msra.mxu0 0.0
        %1178 = vmatprep.subr.mxu0 0.0
        %1179 = vmatpush1.msra.mxu0 0.0
        %1180 = vmatprep.subr.mxu0 0.0
        %1181 = vmatpush1.msra.mxu0 0.0
        %1182 = vmatprep.subr.mxu0 0.0
        %1183 = vmatpush1.msra.mxu0 0.0
        %1184 = vmatprep.subr.mxu0 0.0
        %1185 = vmatpush1.msra.mxu0 0.0
        %1186 = vmatprep.mubr.f32.mxu0 0.0
        %1187 = vmatmul.mubr.f32.gmra.mrb[0].mxu0 %v1120
        %v1188 = vpop.f32.mrb[0].mxu0
        %v1189 = vadd.f32 0.0, %v1188
        %v1190 = vpop.f32.mrb[0].mxu0
        %1191 = vdwg.mxu0
        %v1193 = vsel %vm1089, %v1105, 0
        %1195 = vmatprep.subr.mxu0 0.0
        %1196 = vmatpush1.msra.mxu0 %v1106
        %1197 = vmatprep.subr.mxu0 0.0
        %1198 = vmatpush1.msra.mxu0 %v1107
        %1199 = vmatprep.subr.mxu0 0.0
        %1200 = vmatpush1.msra.mxu0 0.0
        %1201 = vmatprep.subr.mxu0 0.0
        %1202 = vmatpush1.msra.mxu0 0.0
        %1203 = vmatprep.subr.mxu0 0.0
        %1204 = vmatpush1.msra.mxu0 0.0
        %1205 = vmatprep.subr.mxu0 0.0
        %1206 = vmatpush1.msra.mxu0 0.0
        %1207 = vmatprep.subr.mxu0 0.0
        %1208 = vmatpush1.msra.mxu0 0.0
        %1209 = vmatprep.subr.mxu0 0.0
        %1210 = vmatpush1.msra.mxu0 0.0
        %1211 = vmatprep.subr.mxu0 0.0
        %1212 = vmatpush1.msra.mxu0 0.0
        %1213 = vmatprep.subr.mxu0 0.0
        %1214 = vmatpush1.msra.mxu0 0.0
        %1215 = vmatprep.subr.mxu0 0.0
        %1216 = vmatpush1.msra.mxu0 0.0
        %1217 = vmatprep.subr.mxu0 0.0
        %1218 = vmatpush1.msra.mxu0 0.0
        %1219 = vmatprep.subr.mxu0 0.0
        %1220 = vmatpush1.msra.mxu0 0.0
        %1221 = vmatprep.subr.mxu0 0.0
        %1222 = vmatpush1.msra.mxu0 0.0
        %1223 = vmatprep.subr.mxu0 0.0
        %1224 = vmatpush1.msra.mxu0 0.0
        %1225 = vmatprep.subr.mxu0 0.0
        %1226 = vmatpush1.msra.mxu0 0.0
        %1227 = vmatprep.subr.mxu0 0.0
        %1228 = vmatpush1.msra.mxu0 0.0
        %1229 = vmatprep.subr.mxu0 0.0
        %1230 = vmatpush1.msra.mxu0 0.0
        %1231 = vmatprep.subr.mxu0 0.0
        %1232 = vmatpush1.msra.mxu0 0.0
        %1233 = vmatprep.subr.mxu0 0.0
        %1234 = vmatpush1.msra.mxu0 0.0
        %1235 = vmatprep.subr.mxu0 0.0
        %1236 = vmatpush1.msra.mxu0 0.0
        %1237 = vmatprep.subr.mxu0 0.0
        %1238 = vmatpush1.msra.mxu0 0.0
        %1239 = vmatprep.subr.mxu0 0.0
        %1240 = vmatpush1.msra.mxu0 0.0
        %1241 = vmatprep.subr.mxu0 0.0
        %1242 = vmatpush1.msra.mxu0 0.0
        %1243 = vmatprep.subr.mxu0 0.0
        %1244 = vmatpush1.msra.mxu0 0.0
        %1245 = vmatprep.subr.mxu0 0.0
        %1246 = vmatpush1.msra.mxu0 0.0
        %1247 = vmatprep.subr.mxu0 0.0
        %1248 = vmatpush1.msra.mxu0 0.0
        %1249 = vmatprep.subr.mxu0 0.0
        %1250 = vmatpush1.msra.mxu0 0.0
        %1251 = vmatprep.subr.mxu0 0.0
        %1252 = vmatpush1.msra.mxu0 0.0
        %1253 = vmatprep.subr.mxu0 0.0
        %1254 = vmatpush1.msra.mxu0 0.0
        %1255 = vmatprep.subr.mxu0 0.0
        %1256 = vmatpush1.msra.mxu0 0.0
        %1257 = vmatprep.subr.mxu0 0.0
        %1258 = vmatpush1.msra.mxu0 0.0
        %1259 = vmatprep.mubr.f32.mxu0 0.0
        %1260 = vmatmul.mubr.f32.gmra.mrb[0].mxu0 %v1193
        %v1261 = vpop.f32.mrb[0].mxu0
        %v1262 = vadd.f32 %v1189, %v1261
        %v1263 = vpop.f32.mrb[0].mxu0
        %1264 = vdwg.mxu0
        %s1265 = scalar_lea.vmem [#allocation3], 4
        %v1266 = vld [vmem:[%s1265] ss:$8 sm:$0xf]
        %v1267 = vld [vmem:[%s1265] ss:$8 sm:$0xf0]
        %v1268 = vor.u32 %v1266, %v1267
        %s1269 = scalar_lea.vmem [#allocation3], 5
        %v1270 = vld [vmem:[%s1269] ss:$8 sm:$0xf]
        %v1271 = vld [vmem:[%s1269] ss:$8 sm:$0xf0]
        %v1272 = vor.u32 %v1270, %v1271
        %v1273 = vmax.f32 %v1268, %v1272
        %v1274 = vld [vmem:[%s1 + $0x3d] sm:$0xff]
        %v1275 = vld [vmem:[%s1 + $0x45] sm:$0xff]
        %v1277 = vsel %vm1089, %v1273, 0
        %1279 = vmatprep.subr.mxu0 0.0
        %1280 = vmatpush1.msra.mxu0 %v1274
        %1281 = vmatprep.subr.mxu0 0.0
        %1282 = vmatpush1.msra.mxu0 %v1275
        %1283 = vmatprep.subr.mxu0 0.0
        %1284 = vmatpush1.msra.mxu0 0.0
        %1285 = vmatprep.subr.mxu0 0.0
        %1286 = vmatpush1.msra.mxu0 0.0
        %1287 = vmatprep.subr.mxu0 0.0
        %1288 = vmatpush1.msra.mxu0 0.0
        %1289 = vmatprep.subr.mxu0 0.0
        %1290 = vmatpush1.msra.mxu0 0.0
        %1291 = vmatprep.subr.mxu0 0.0
        %1292 = vmatpush1.msra.mxu0 0.0
        %1293 = vmatprep.subr.mxu0 0.0
        %1294 = vmatpush1.msra.mxu0 0.0
        %1295 = vmatprep.subr.mxu0 0.0
        %1296 = vmatpush1.msra.mxu0 0.0
        %1297 = vmatprep.subr.mxu0 0.0
        %1298 = vmatpush1.msra.mxu0 0.0
        %1299 = vmatprep.subr.mxu0 0.0
        %1300 = vmatpush1.msra.mxu0 0.0
        %1301 = vmatprep.subr.mxu0 0.0
        %1302 = vmatpush1.msra.mxu0 0.0
        %1303 = vmatprep.subr.mxu0 0.0
        %1304 = vmatpush1.msra.mxu0 0.0
        %1305 = vmatprep.subr.mxu0 0.0
        %1306 = vmatpush1.msra.mxu0 0.0
        %1307 = vmatprep.subr.mxu0 0.0
        %1308 = vmatpush1.msra.mxu0 0.0
        %1309 = vmatprep.subr.mxu0 0.0
        %1310 = vmatpush1.msra.mxu0 0.0
        %1311 = vmatprep.subr.mxu0 0.0
        %1312 = vmatpush1.msra.mxu0 0.0
        %1313 = vmatprep.subr.mxu0 0.0
        %1314 = vmatpush1.msra.mxu0 0.0
        %1315 = vmatprep.subr.mxu0 0.0
        %1316 = vmatpush1.msra.mxu0 0.0
        %1317 = vmatprep.subr.mxu0 0.0
        %1318 = vmatpush1.msra.mxu0 0.0
        %1319 = vmatprep.subr.mxu0 0.0
        %1320 = vmatpush1.msra.mxu0 0.0
        %1321 = vmatprep.subr.mxu0 0.0
        %1322 = vmatpush1.msra.mxu0 0.0
        %1323 = vmatprep.subr.mxu0 0.0
        %1324 = vmatpush1.msra.mxu0 0.0
        %1325 = vmatprep.subr.mxu0 0.0
        %1326 = vmatpush1.msra.mxu0 0.0
        %1327 = vmatprep.subr.mxu0 0.0
        %1328 = vmatpush1.msra.mxu0 0.0
        %1329 = vmatprep.subr.mxu0 0.0
        %1330 = vmatpush1.msra.mxu0 0.0
        %1331 = vmatprep.subr.mxu0 0.0
        %1332 = vmatpush1.msra.mxu0 0.0
        %1333 = vmatprep.subr.mxu0 0.0
        %1334 = vmatpush1.msra.mxu0 0.0
        %1335 = vmatprep.subr.mxu0 0.0
        %1336 = vmatpush1.msra.mxu0 0.0
        %1337 = vmatprep.subr.mxu0 0.0
        %1338 = vmatpush1.msra.mxu0 0.0
        %1339 = vmatprep.subr.mxu0 0.0
        %1340 = vmatpush1.msra.mxu0 0.0
        %1341 = vmatprep.subr.mxu0 0.0
        %1342 = vmatpush1.msra.mxu0 0.0
        %1343 = vmatprep.mubr.f32.mxu0 0.0
        %1344 = vmatmul.mubr.f32.gmra.mrb[0].mxu0 %v1277
        %v1345 = vpop.f32.mrb[0].mxu0
        %v1346 = vadd.f32 0.0, %v1345
        %v1347 = vpop.f32.mrb[0].mxu0
        %1348 = vdwg.mxu0
        %v1349 = vadd.f32 %v1262, %v1346
        %s1350 = scalar_lea.vmem [#allocation3], 6
        %v1351 = vld [vmem:[%s1350] ss:$8 sm:$0xf]
        %v1352 = vld [vmem:[%s1350] ss:$8 sm:$0xf0]
        %v1353 = vor.u32 %v1351, %v1352
        %s1354 = scalar_lea.vmem [#allocation3], 7
        %v1355 = vld [vmem:[%s1354] ss:$8 sm:$0xf]
        %v1356 = vld [vmem:[%s1354] ss:$8 sm:$0xf0]
        %v1357 = vor.u32 %v1355, %v1356
        %v1358 = vmax.f32 %v1353, %v1357
        %v1359 = vld [vmem:[%s1 + $0x4d] sm:$0xff]
        %v1360 = vld [vmem:[%s1 + $0x55] sm:$0xff]
        %v1362 = vsel %vm1089, %v1358, 0
        %1364 = vmatprep.subr.mxu0 0.0
        %1365 = vmatpush1.msra.mxu0 %v1359
        %1366 = vmatprep.subr.mxu0 0.0
        %1367 = vmatpush1.msra.mxu0 %v1360
        %1368 = vmatprep.subr.mxu0 0.0
        %1369 = vmatpush1.msra.mxu0 0.0
        %1370 = vmatprep.subr.mxu0 0.0
        %1371 = vmatpush1.msra.mxu0 0.0
        %1372 = vmatprep.subr.mxu0 0.0
        %1373 = vmatpush1.msra.mxu0 0.0
        %1374 = vmatprep.subr.mxu0 0.0
        %1375 = vmatpush1.msra.mxu0 0.0
        %1376 = vmatprep.subr.mxu0 0.0
        %1377 = vmatpush1.msra.mxu0 0.0
        %1378 = vmatprep.subr.mxu0 0.0
        %1379 = vmatpush1.msra.mxu0 0.0
        %1380 = vmatprep.subr.mxu0 0.0
        %1381 = vmatpush1.msra.mxu0 0.0
        %1382 = vmatprep.subr.mxu0 0.0
        %1383 = vmatpush1.msra.mxu0 0.0
        %1384 = vmatprep.subr.mxu0 0.0
        %1385 = vmatpush1.msra.mxu0 0.0
        %1386 = vmatprep.subr.mxu0 0.0
        %1387 = vmatpush1.msra.mxu0 0.0
        %1388 = vmatprep.subr.mxu0 0.0
        %1389 = vmatpush1.msra.mxu0 0.0
        %1390 = vmatprep.subr.mxu0 0.0
        %1391 = vmatpush1.msra.mxu0 0.0
        %1392 = vmatprep.subr.mxu0 0.0
        %1393 = vmatpush1.msra.mxu0 0.0
        %1394 = vmatprep.subr.mxu0 0.0
        %1395 = vmatpush1.msra.mxu0 0.0
        %1396 = vmatprep.subr.mxu0 0.0
        %1397 = vmatpush1.msra.mxu0 0.0
        %1398 = vmatprep.subr.mxu0 0.0
        %1399 = vmatpush1.msra.mxu0 0.0
        %1400 = vmatprep.subr.mxu0 0.0
        %1401 = vmatpush1.msra.mxu0 0.0
        %1402 = vmatprep.subr.mxu0 0.0
        %1403 = vmatpush1.msra.mxu0 0.0
        %1404 = vmatprep.subr.mxu0 0.0
        %1405 = vmatpush1.msra.mxu0 0.0
        %1406 = vmatprep.subr.mxu0 0.0
        %1407 = vmatpush1.msra.mxu0 0.0
        %1408 = vmatprep.subr.mxu0 0.0
        %1409 = vmatpush1.msra.mxu0 0.0
        %1410 = vmatprep.subr.mxu0 0.0
        %1411 = vmatpush1.msra.mxu0 0.0
        %1412 = vmatprep.subr.mxu0 0.0
        %1413 = vmatpush1.msra.mxu0 0.0
        %1414 = vmatprep.subr.mxu0 0.0
        %1415 = vmatpush1.msra.mxu0 0.0
        %1416 = vmatprep.subr.mxu0 0.0
        %1417 = vmatpush1.msra.mxu0 0.0
        %1418 = vmatprep.subr.mxu0 0.0
        %1419 = vmatpush1.msra.mxu0 0.0
        %1420 = vmatprep.subr.mxu0 0.0
        %1421 = vmatpush1.msra.mxu0 0.0
        %1422 = vmatprep.subr.mxu0 0.0
        %1423 = vmatpush1.msra.mxu0 0.0
        %1424 = vmatprep.subr.mxu0 0.0
        %1425 = vmatpush1.msra.mxu0 0.0
        %1426 = vmatprep.subr.mxu0 0.0
        %1427 = vmatpush1.msra.mxu0 0.0
        %1428 = vmatprep.mubr.f32.mxu0 0.0
        %1429 = vmatmul.mubr.f32.gmra.mrb[0].mxu0 %v1362
        %v1430 = vpop.f32.mrb[0].mxu0
        %v1431 = vadd.f32 0.0, %v1430
        %v1432 = vpop.f32.mrb[0].mxu0
        %1433 = vdwg.mxu0
        %v1434 = vadd.f32 %v1349, %v1431
        %v1435 = vld [vmem:[%s1 + $0x5d] sm:$0x1]
        %v1436 = vlaneseq
        %v1437 = vshrl.u32 %v1436, 7
        %v1438 = vsub.s32 0, %v1437
        %v1439 = vrot.slane %v1435, %v1438
        %v1440 = vadd.f32 %v1434, %v1439
        %vm1441 = vcmp.gt.f32.partialorder %v1440, 0.0
        %v1442 = vmul.f32 %v1440, 0.9
        %v1443 = vsel %vm1441, %v1440, %v1442
        %v1444 = vld [vmem:[%s1 + $0x5e] sm:$0xff]
        %v1445 = vld [vmem:[%s1 + $0x66] sm:$0x1]
        %v1446 = vlaneseq
        %v1447 = vshrl.u32 %v1446, 7
        %v1448 = vsub.s32 0, %v1447
        %v1449 = vrot.slane %v1445, %v1448
        %v1451 = vsel %vm460, %v1443, 0
        %1453 = vmatprep.subr.mxu0 0.0
        %1454 = vmatpush1.msra.mxu0 %v1444
        %1455 = vmatprep.subr.mxu0 0.0
        %1456 = vmatpush1.msra.mxu0 0.0
        %1457 = vmatprep.subr.mxu0 0.0
        %1458 = vmatpush1.msra.mxu0 0.0
        %1459 = vmatprep.subr.mxu0 0.0
        %1460 = vmatpush1.msra.mxu0 0.0
        %1461 = vmatprep.subr.mxu0 0.0
        %1462 = vmatpush1.msra.mxu0 0.0
        %1463 = vmatprep.subr.mxu0 0.0
        %1464 = vmatpush1.msra.mxu0 0.0
        %1465 = vmatprep.subr.mxu0 0.0
        %1466 = vmatpush1.msra.mxu0 0.0
        %1467 = vmatprep.subr.mxu0 0.0
        %1468 = vmatpush1.msra.mxu0 0.0
        %1469 = vmatprep.subr.mxu0 0.0
        %1470 = vmatpush1.msra.mxu0 0.0
        %1471 = vmatprep.subr.mxu0 0.0
        %1472 = vmatpush1.msra.mxu0 0.0
        %1473 = vmatprep.subr.mxu0 0.0
        %1474 = vmatpush1.msra.mxu0 0.0
        %1475 = vmatprep.subr.mxu0 0.0
        %1476 = vmatpush1.msra.mxu0 0.0
        %1477 = vmatprep.subr.mxu0 0.0
        %1478 = vmatpush1.msra.mxu0 0.0
        %1479 = vmatprep.subr.mxu0 0.0
        %1480 = vmatpush1.msra.mxu0 0.0
        %1481 = vmatprep.subr.mxu0 0.0
        %1482 = vmatpush1.msra.mxu0 0.0
        %1483 = vmatprep.subr.mxu0 0.0
        %1484 = vmatpush1.msra.mxu0 0.0
        %1485 = vmatprep.subr.mxu0 0.0
        %1486 = vmatpush1.msra.mxu0 0.0
        %1487 = vmatprep.subr.mxu0 0.0
        %1488 = vmatpush1.msra.mxu0 0.0
        %1489 = vmatprep.subr.mxu0 0.0
        %1490 = vmatpush1.msra.mxu0 0.0
        %1491 = vmatprep.subr.mxu0 0.0
        %1492 = vmatpush1.msra.mxu0 0.0
        %1493 = vmatprep.subr.mxu0 0.0
        %1494 = vmatpush1.msra.mxu0 0.0
        %1495 = vmatprep.subr.mxu0 0.0
        %1496 = vmatpush1.msra.mxu0 0.0
        %1497 = vmatprep.subr.mxu0 0.0
        %1498 = vmatpush1.msra.mxu0 0.0
        %1499 = vmatprep.subr.mxu0 0.0
        %1500 = vmatpush1.msra.mxu0 0.0
        %1501 = vmatprep.subr.mxu0 0.0
        %1502 = vmatpush1.msra.mxu0 0.0
        %1503 = vmatprep.subr.mxu0 0.0
        %1504 = vmatpush1.msra.mxu0 0.0
        %1505 = vmatprep.subr.mxu0 0.0
        %1506 = vmatpush1.msra.mxu0 0.0
        %1507 = vmatprep.subr.mxu0 0.0
        %1508 = vmatpush1.msra.mxu0 0.0
        %1509 = vmatprep.subr.mxu0 0.0
        %1510 = vmatpush1.msra.mxu0 0.0
        %1511 = vmatprep.subr.mxu0 0.0
        %1512 = vmatpush1.msra.mxu0 0.0
        %1513 = vmatprep.subr.mxu0 0.0
        %1514 = vmatpush1.msra.mxu0 0.0
        %1515 = vmatprep.subr.mxu0 0.0
        %1516 = vmatpush1.msra.mxu0 0.0
        %1517 = vmatprep.mubr.f32.mxu0 0.0
        %1518 = vmatmul.mubr.f32.gmra.mrb[0].mxu0 %v1451
        %v1519 = vpop.f32.mrb[0].mxu0
        %v1520 = vadd.f32 %v1449, %v1519
        %v1521 = vpop.f32.mrb[0].mxu0
        %1522 = vdwg.mxu0
        %vm1523 = vcmp.gt.f32.partialorder %v1520, 0.0
        %v1524 = vmul.f32 %v1520, 0.9
        %v1525 = vsel %vm1523, %v1520, %v1524
        %v1526 = vlaneseq
        %v1527 = vand.u32 %v1526, 127
        %vm1528 = vcmp.lt.s32.totalorder %v1527, 4
        %v1529 = vsel %vm1528, %v1525, -1e+30
        %1530 = vmax.xlane.f32.xlu0 %v1529
        %v1531 = vpop.xlane.xlu0 %1530
        %v1532 = vsub.f32 %v1525, %v1531
        %v1533 = vmul.f32 %v1532, 1.442695
        %v1534 = vpow.pop %v1533
        %v1535 = vsel %vm1528, %v1534, 0.0
        %1536 = vadd.xlane.f32.xlu0 %v1535
        %v1537 = vpop.xlane.xlu0 %1536
        %v1538 = vlog2.pop %v1537
        %v1539 = vmul.f32 %v1538, 0.6931472
        %v1540 = vsub.f32 %v1532, %v1539
        %1541 = vst [vmem:[%s137] sm:$0xff] %v1540
        %s1542 = sand.u32 %s71, 1
        %s1543 = scalar_lea.sflag [#allocation5], %s1542
        %s1544 = sand.u32 %s71, 1
        %s1545 = smul.addr %s1544, 8
        %s1546 = scalar_lea.vmem [#allocation4], %s1545
        // Predicated region
        $region29: #{tpu_custom_call.1} parent=27 // pred_check
          %p1547 = pneg %p81
        $region30: #{tpu_custom_call.1} parent=27 // pred_check_branch
          %1549 = sbr.rel (%p1547) target = $region32
        $region31: #{tpu_custom_call.1} parent=27 // pred_region
          %s1551 = ssub.s32 128, 128
          %1552 = vsyncadd %s1543, %s1551
          %s1553 = smul.addr %s16, 128
          %s1554 = scalar_lea.hbm %s2, %s1553
          %s1556 = sshll.u32 %s1546, 4
          %s1557 = int_to_ptr.vmem [resolvable:$true] %s1556
          %1559 = dma.vmem_to_hbm [thread:$0]  %s1557, 128, %s1554, %s1543
        $region32: #{tpu_custom_call.1} parent=27 // pred_fallthru
          _
      $region28: #{tpu_custom_call.1} parent=5 // pred_fallthru
        _
      %p1560 = scmp.le.s32.totalorder 2, %s11
      // Predicated region
      $region33: #{tpu_custom_call.1} parent=5 // pred_check
        %p1561 = pneg %p1560
      $region34: #{tpu_custom_call.1} parent=5 // pred_check_branch
        %1563 = sbr.rel (%p1561) target = $region36
      $region35: #{tpu_custom_call.1} parent=5 // pred_region
        %s1564 = ssub.s32 %s11, 2
        // Predicated region
        $region37: #{tpu_custom_call.1} parent=35 // pred_check
          %p1565 = pneg %p87
        $region38: #{tpu_custom_call.1} parent=35 // pred_check_branch
          %1567 = sbr.rel (%p1565) target = $region40
        $region39: #{tpu_custom_call.1} parent=35 // pred_region
          %s1568 = sand.u32 %s72, 1
          %s1569 = scalar_lea.sflag [#allocation5], %s1568
          %s1570 = sand.u32 %s72, 1
          %s1571 = smul.addr %s1570, 8
          %s1572 = scalar_lea.vmem [#allocation4], %s1571
          %1573 = dma.done %s1569, 128
        $region40: #{tpu_custom_call.1} parent=35 // pred_fallthru
          _
      $region36: #{tpu_custom_call.1} parent=5 // pred_fallthru
        _
    $region6: #{tpu_custom_call.1} parent=1 // loop_footer
      %s15 = sadd.s32 1, %s11
    $region7: #{tpu_custom_call.1} parent=1 // loop_footer_branch
      %10 = sbr.rel target = $region3
    $region8: #{tpu_custom_call.1} parent=1 // loop_exit
      _
    %1574 = vsyncpa [#allocation5], 1
    %s1575 = scalar_lea.sflag [#allocation5], 1
    %1576 = vsyncpa %s1575, 1

</llo_original>
